<compile_context>
chip_gen: v7x
topology: tpu7x:2x2x1
jax: 0.10.0
libtpu: 0.0.40
codegen_flags: <defaults>
</compile_context>

<pallas_src>
import functools

import jax
import jax.numpy as jnp
from jax.experimental import pallas as pl
from jax.experimental.pallas import tpu as pltpu

MATMUL_DTYPE = jnp.bfloat16   # MXU input dtype; accumulation stays f32 via preferred_element_type
ACT_DTYPE = jnp.bfloat16      # HBM-resident activation dtype between kernels (halves DMA bytes)
_TPAD = 8                     # leading pad rows of the bottleneck 't' scratch (keeps stores aligned)


def _mm(a, b):
    return jnp.dot(a.astype(MATMUL_DTYPE), b.astype(MATMUL_DTYPE),
                   preferred_element_type=jnp.float32)


def _silu(x):
    return x * jax.nn.sigmoid(x)


@functools.lru_cache(maxsize=None)
def _budgets():
    """Generation-aware sizing: v5e/v6e have 128 MiB VMEM, v7x only 64 MiB per TensorCore."""
    vmem = 64 << 20
    try:
        fn = getattr(pltpu, "get_tpu_info", None)
        if fn is not None:
            cap = getattr(fn(), "vmem_capacity_bytes", None)
            if cap:
                vmem = int(cap)
    except Exception:
        pass
    if vmem >= (96 << 20):    # v5e / v6e: bigger streaming tiles, higher scoped-VMEM limit
        return {"vmem_limit": 64 << 20, "tile_rows": 2048, "band_bytes": 2 << 20}
    # v7x-safe defaults (64 MiB VMEM; its 3.2 TB/s HBM loses little with smaller tiles)
    return {"vmem_limit": 48 << 20, "tile_rows": 1024, "band_bytes": 1 << 20}


def _pick_tile(m, cap):
    """Largest multiple-of-8 divisor of m that is <= cap (else m itself)."""
    for t in range(min(cap, m), 7, -1):
        if t % 8 == 0 and m % t == 0:
            return t
    return m   # TODO(synk): pad ragged hw (not a multiple of 8) instead of whole-extent blocks.


def _pick_band(h, w, c, band_bytes):
    """Rows per band for the fused bottleneck: divisor of h within the VMEM byte budget."""
    cap = max(1, band_bytes // max(1, w * c * 4))
    if h > 1:
        cap = min(cap, max(1, h // 2))
    best = 1
    for th in range(1, h + 1):
        if h % th == 0 and th <= cap:
            best = th
    return best


# -----------------------------------------------------------------------------
# Kernel 1: cv1 (1x1 conv + SiLU), one matmul vs. the combined weight, two chunk
#           outputs + per-tile EMA pooling partials (all grid axes parallel).
# -----------------------------------------------------------------------------
def _make_cv1_kernel(c):
    def kernel(x_ref, w_ref, b_ref, ya_ref, yb_ref, s_ref, m_ref):
        y = _silu(_mm(x_ref[0], w_ref[...]) + b_ref[...])            # (tm, 2c) f32
        ya_ref[0] = y[:, :c].astype(ya_ref.dtype)
        yb_ref[0] = y[:, c:].astype(yb_ref.dtype)
        c2x = 2 * c
        s_ref[...] = jnp.sum(y, axis=0, keepdims=True).reshape(1, 1, 1, c2x)
        m_ref[...] = jnp.max(y, axis=0, keepdims=True).reshape(1, 1, 1, c2x)
    return kernel


def cv1_split(x, w, b):
    n, hw, c1 = x.shape
    c2x = w.shape[1]
    c = c2x // 2
    bud = _budgets()
    tm = _pick_tile(hw, bud["tile_rows"])
    nt = hw // tm
    f32 = jnp.float32
    big = lambda cc: pl.BlockSpec((1, tm, cc), lambda bi, i: (bi, i, 0))
    st = pl.BlockSpec((1, 1, 1, c2x), lambda bi, i: (bi, i, 0, 0))
    return pl.pallas_call(
        _make_cv1_kernel(c),
        out_shape=[jax.ShapeDtypeStruct((n, hw, c), ACT_DTYPE),
                   jax.ShapeDtypeStruct((n, hw, c), ACT_DTYPE),
                   jax.ShapeDtypeStruct((n, nt, 1, c2x), f32),
                   jax.ShapeDtypeStruct((n, nt, 1, c2x), f32)],
        grid=(n, nt),
        in_specs=[pl.BlockSpec((1, tm, c1), lambda bi, i: (bi, i, 0)),
                  pl.BlockSpec((c1, c2x), lambda bi, i: (0, 0)),
                  pl.BlockSpec((1, c2x), lambda bi, i: (0, 0))],
        out_specs=[big(c), big(c), st, st],
        compiler_params=pltpu.CompilerParams(
            dimension_semantics=("parallel", "parallel"),
            vmem_limit_bytes=bud["vmem_limit"]),
    )(x, w, b.reshape(1, c2x))


# -----------------------------------------------------------------------------
# Kernel 2: fused Bottleneck (1x1 conv+SiLU -> 3x3 SAME conv+SiLU -> +residual)
#           + per-band EMA pooling partials.  Inner tensor 't' never touches HBM.
# -----------------------------------------------------------------------------
def _make_bottleneck_kernel(th, w, c, use_stage):
    hw_band = th * w

    def kernel(prev_ref, top_ref, bot_ref, w1_ref, b1_ref, w2_ref, b2_ref,
               out_ref, sum_ref, max_ref, t_ref, *maybe_stage):
        i = pl.program_id(1)
        nb = pl.num_programs(1)
        w1 = w1_ref[...]
        b1 = b1_ref[...]

        # ---- fused 1x1 conv + SiLU into the padded VMEM 't' scratch -------------
        prev2d = prev_ref[0].reshape(hw_band, c)
        t_ref[pl.ds(_TPAD + w, hw_band), :] = _silu(_mm(prev2d, w1) + b1)
        # 1-row halos fetched via clamped BlockSpec index maps; zeroed at the image border.
        t_top = _silu(_mm(top_ref[0, 0], w1) + b1) * (i > 0).astype(jnp.float32)
        t_ref[pl.ds(_TPAD, w), :] = t_top
        t_bot = _silu(_mm(bot_ref[0, 0], w1) + b1) * (i < nb - 1).astype(jnp.float32)
        t_ref[pl.ds(_TPAD + (th + 1) * w, w), :] = t_bot

        # ---- 3x3 SAME conv: taps read directly out of the padded scratch --------
        # Column masks built in-kernel (no lane-padded HBM mask inputs).
        col = jax.lax.broadcasted_iota(jnp.int32, (hw_band, 1), 0) % w
        not_first = col != 0          # dx == 0 wraps across the row boundary at x == 0
        not_last = col != (w - 1)     # dx == 2 wraps at x == W - 1

        def tap(dy, dx):
            start = _TPAD + dy * w + (dx - 1)          # static, >= _TPAD - 1 >= 0
            slab = t_ref[pl.ds(start, hw_band), :]
            if dx == 0:
                return jnp.where(not_first, slab, 0.0)
            if dx == 2:
                return jnp.where(not_last, slab, 0.0)
            return slab

        if use_stage:
            # c % 128 == 0: stage the 9 taps lane-aligned and do ONE big-K (9c) MXU dot.
            stage_ref = maybe_stage[0]
            for dy in range(3):
                for dx in range(3):
                    k = dy * 3 + dx
                    stage_ref[:, k * c:(k + 1) * c] = tap(dy, dx).astype(stage_ref.dtype)
            acc = _mm(stage_ref[...], w2_ref[...])
        else:
            # small c: 9 K=c dots accumulated in a Python-level value (no scratch RMW).
            acc = None
            for dy in range(3):
                for dx in range(3):
                    k = dy * 3 + dx
                    contrib = _mm(tap(dy, dx), w2_ref[pl.ds(k * c, c), :])
                    acc = contrib if acc is None else acc + contrib

        y = _silu(acc + b2_ref[...])
        out2d = prev2d.astype(jnp.float32) + y                     # bottleneck shortcut
        out_ref[...] = out2d.astype(out_ref.dtype).reshape(1, th, w, c)

        # ---- per-band EMA pooling partials (reduced in the wrapper) -------------
        sum_ref[...] = jnp.sum(out2d, axis=0, keepdims=True).reshape(1, 1, 1, c)
        max_ref[...] = jnp.max(out2d, axis=0, keepdims=True).reshape(1, 1, 1, c)

    return kernel


def bottleneck_fused(prev4, w1, b1, w2_rows, b2):
    n, h, w, c = prev4.shape
    bud = _budgets()
    th = _pick_band(h, w, c, bud["band_bytes"])
    nb = h // th
    use_stage = (c % 128 == 0)
    f32 = jnp.float32
    st = pl.BlockSpec((1, 1, 1, c), lambda bi, i: (bi, i, 0, 0))
    scratch = [pltpu.VMEM(((th + 2) * w + 2 * _TPAD, c), jnp.float32)]   # padded 't' band
    if use_stage:
        scratch.append(pltpu.VMEM((th * w, 9 * c), ACT_DTYPE))           # im2col staging slab
    return pl.pallas_call(
        _make_bottleneck_kernel(th, w, c, use_stage),
        out_shape=[jax.ShapeDtypeStruct((n, h, w, c), ACT_DTYPE),
                   jax.ShapeDtypeStruct((n, nb, 1, c), f32),
                   jax.ShapeDtypeStruct((n, nb, 1, c), f32)],
        grid=(n, nb),
        in_specs=[
            pl.BlockSpec((1, th, w, c), lambda bi, i: (bi, i, 0, 0)),
            # 1-row halos via clamped row indices (block row size 1 => block idx == row idx);
            # out-of-image halo rows are zeroed inside the kernel.
            pl.BlockSpec((1, 1, w, c),
                         lambda bi, i: (bi, jnp.maximum(i * th - 1, 0), 0, 0)),
            pl.BlockSpec((1, 1, w, c),
                         lambda bi, i: (bi, jnp.minimum(i * th + th, h - 1), 0, 0)),
            pl.BlockSpec((c, c), lambda bi, i: (0, 0)),
            pl.BlockSpec((1, c), lambda bi, i: (0, 0)),
            pl.BlockSpec((9 * c, c), lambda bi, i: (0, 0)),
            pl.BlockSpec((1, c), lambda bi, i: (0, 0)),
        ],
        out_specs=[pl.BlockSpec((1, th, w, c), lambda bi, i: (bi, i, 0, 0)), st, st],
        scratch_shapes=scratch,
        compiler_params=pltpu.CompilerParams(
            dimension_semantics=("parallel", "parallel"),
            vmem_limit_bytes=bud["vmem_limit"]),
    )(prev4, prev4, prev4, w1, b1.reshape(1, c), w2_rows, b2.reshape(1, c))


# -----------------------------------------------------------------------------
# Kernel 3: cv2 (1x1 conv + SiLU) with in-kernel EMA gating and the combined weight
# -----------------------------------------------------------------------------
def _make_cv2_kernel(nbr, c, lane_fused):
    def kernel(*refs):
        y_refs = refs[0:nbr]
        g_refs = refs[nbr:2 * nbr]
        w_ref = refs[2 * nbr]
        bias_ref = refs[2 * nbr + 1]
        o_ref = refs[2 * nbr + 2]
        gated = [y_refs[b][0].astype(jnp.float32) * g_refs[b][0] for b in range(nbr)]
        if lane_fused:
            acc = _mm(jnp.concatenate(gated, axis=-1), w_ref[...])   # one big-K dot
        else:
            acc = None
            for b in range(nbr):
                contrib = _mm(gated[b], w_ref[pl.ds(b * c, c), :])
                acc = contrib if acc is None else acc + contrib
        o_ref[0] = _silu(acc + bias_ref[...]).astype(o_ref.dtype)
    return kernel


def cv2_fused(branches, gates, w_all, bias, out_dtype=jnp.float32):
    nbr = len(branches)
    n, hw, c = branches[0].shape
    c2 = w_all.shape[1]
    bud = _budgets()
    tm = _pick_tile(hw, bud["tile_rows"])
    lane_fused = (c % 128 == 0)
    y_spec = pl.BlockSpec((1, tm, c), lambda bi, i: (bi, i, 0))
    g_spec = pl.BlockSpec((1, 1, c), lambda bi, i: (bi, 0, 0))
    return pl.pallas_call(
        _make_cv2_kernel(nbr, c, lane_fused),
        out_shape=jax.ShapeDtypeStruct((n, hw, c2), out_dtype),
        grid=(n, hw // tm),
        in_specs=[y_spec] * nbr + [g_spec] * nbr
                 + [pl.BlockSpec((nbr * c, c2), lambda bi, i: (0, 0)),
                    pl.BlockSpec((1, c2), lambda bi, i: (0, 0))],
        out_specs=pl.BlockSpec((1, tm, c2), lambda bi, i: (bi, i, 0)),
        compiler_params=pltpu.CompilerParams(
            dimension_semantics=("parallel", "parallel"),
            vmem_limit_bytes=bud["vmem_limit"]),
    )(*branches, *gates, w_all, bias.reshape(1, c2))


# -----------------------------------------------------------------------------
# Parameter setup (deterministic, BN folded in eval mode, fan-in scaled init)
# -----------------------------------------------------------------------------
def _fold_conv_bn(key, cin, cout, k):
    """Conv2d(cin, cout, k, bias=False) + BatchNorm2d(cout), folded, as HWIO."""
    kw, kg, kb, km, kv = jax.random.split(key, 5)
    std = float((cin * k * k) ** -0.5)
    w = std * jax.random.normal(kw, (cout, cin, k, k), jnp.float32)   # torch OIHW
    gamma = 1.0 + 0.1 * jax.random.normal(kg, (cout,), jnp.float32)
    beta = 0.1 * jax.random.normal(kb, (cout,), jnp.float32)
    mean = 0.1 * jax.random.normal(km, (cout,), jnp.float32)
    var = jax.random.uniform(kv, (cout,), jnp.float32, minval=0.5, maxval=1.5)
    scale = gamma / jnp.sqrt(var + 1e-5)
    w_f = w * scale[:, None, None, None]
    b_f = beta - mean * scale
    return jnp.transpose(w_f, (2, 3, 1, 0)), b_f                      # (k, k, cin, cout), (cout,)


def init_params(key, c1, c2, n):
    c = c2 // 2
    ks = jax.random.split(key, 3 + n)
    p = {'c': c, 'n': n}
    w, b = _fold_conv_bn(ks[0], c1, 2 * c, 1)
    p['cv1_w'], p['cv1_b'] = w[0, 0], b
    w, b = _fold_conv_bn(ks[1], (2 + n) * c, c2, 1)
    p['cv2_w'], p['cv2_b'] = w[0, 0], b
    p['m'] = []
    for i in range(n):
        k1, k2 = jax.random.split(ks[2 + i], 2)
        w1, b1 = _fold_conv_bn(k1, c, c, 1)         # Bottleneck.cv1: 1x1
        w2, b2 = _fold_conv_bn(k2, c, c, 3)         # Bottleneck.cv2: 3x3
        p['m'].append((w1[0, 0], b1, w2, b2))
    ke = jax.random.split(ks[2 + n], 4)
    ch = c // 4
    p['ema_w1'] = (c ** -0.5) * jax.random.normal(ke[0], (c, ch), jnp.float32)
    p['ema_b1'] = 0.1 * jax.random.normal(ke[1], (ch,), jnp.float32)
    p['ema_w2'] = (ch ** -0.5) * jax.random.normal(ke[2], (ch, c), jnp.float32)
    p['ema_b2'] = 0.1 * jax.random.normal(ke[3], (c,), jnp.float32)
    return p


# -----------------------------------------------------------------------------
# Forward (wrapper glue: layout, tiny stat reductions, EMA gate MLP in plain XLA)
# -----------------------------------------------------------------------------
def c2f_faster_ema_forward(x_nchw, p):
    n, c1, h, w = x_nchw.shape
    c = p['c']
    hw = h * w
    bf = ACT_DTYPE
    x = jnp.transpose(x_nchw, (0, 2, 3, 1)).reshape(n, hw, c1).astype(bf)

    # cv1 (1x1 conv + SiLU) with the combined (c1, 2c) weight; per-tile pooling partials.
    ya, yb, s0, m0 = cv1_split(x, p['cv1_w'].astype(bf), p['cv1_b'])
    s0 = jnp.sum(s0, axis=1).reshape(n, 2 * c)
    m0 = jnp.max(m0, axis=1).reshape(n, 2 * c)

    branches = [ya, yb]
    sums = [s0[:, :c], s0[:, c:]]
    maxs = [m0[:, :c], m0[:, c:]]

    prev = yb.reshape(n, h, w, c)
    for (w1, b1, w2, b2) in p['m']:                  # fused Bottleneck stack
        out4, s_o, m_o = bottleneck_fused(prev, w1.astype(bf), b1,
                                          w2.reshape(9 * c, c).astype(bf), b2)
        branches.append(out4.reshape(n, hw, c))
        sums.append(jnp.sum(s_o, axis=1).reshape(n, c))
        maxs.append(jnp.max(m_o, axis=1).reshape(n, c))
        prev = out4

    # EMA channel gates: tiny ((2+n)*N, c) MLP -> plain XLA (per perf review: removes a
    # pallas_call + HBM round trip on the critical path).
    pooled = jnp.stack([s * (1.0 / hw) + m for s, m in zip(sums, maxs)], axis=0)  # (nbr, n, c)
    hid = jnp.maximum(pooled @ p['ema_w1'] + p['ema_b1'], 0.0)
    gates = jax.nn.sigmoid(hid @ p['ema_w2'] + p['ema_b2'])                        # f32
    nbr = len(branches)
    gate_list = [gates[i].reshape(n, 1, c) for i in range(nbr)]

    # cv2 (1x1 conv + SiLU) with in-kernel gating against the combined weight (no concat).
    out = cv2_fused(branches, gate_list, p['cv2_w'].astype(bf), p['cv2_b'])
    c2 = p['cv2_w'].shape[1]
    return jnp.transpose(out.reshape(n, h, w, c2), (0, 3, 1, 2))     # back to NCHW


# -----------------------------------------------------------------------------
# Pure-JAX f32 reference (for correctness check only)
# -----------------------------------------------------------------------------
def _ref_forward(x_nchw, p):
    hp = jax.lax.Precision.HIGHEST

    def pw(x, w, b):
        y = jnp.einsum('nhwc,cd->nhwd', x, w, precision=hp) + b
        return y * jax.nn.sigmoid(y)

    def c3(x, w, b):
        y = jax.lax.conv_general_dilated(
            x, w, (1, 1), 'SAME',
            dimension_numbers=('NHWC', 'HWIO', 'NHWC'), precision=hp) + b
        return y * jax.nn.sigmoid(y)

    def ema(x):
        s = jnp.mean(x, (1, 2)) + jnp.max(x, (1, 2))
        h = jnp.maximum(s @ p['ema_w1'] + p['ema_b1'], 0.0)
        g = jax.nn.sigmoid(h @ p['ema_w2'] + p['ema_b2'])
        return x * g[:, None, None, :]

    c = p['c']
    x = jnp.transpose(x_nchw, (0, 2, 3, 1))
    y0 = pw(x, p['cv1_w'], p['cv1_b'])
    ys = [y0[..., :c], y0[..., c:]]
    for (w1, b1, w2, b2) in p['m']:
        prev = ys[-1]
        ys.append(prev + c3(pw(prev, w1, b1), w2, b2))
    ys = [ema(yi) for yi in ys]
    out = pw(jnp.concatenate(ys, axis=-1), p['cv2_w'], p['cv2_b'])
    return jnp.transpose(out, (0, 3, 1, 2))


if __name__ == "__main__":
    key = jax.random.PRNGKey(0)
    k1, k2, k3, k4 = jax.random.split(key, 4)

    def run_case(kp, kx, N, C1, H, W, C2, n):
        x = jax.random.normal(kx, (N, C1, H, W), jnp.float32)
        params = init_params(kp, C1, C2, n)
        out = jax.block_until_ready(c2f_faster_ema_forward(x, params))
        assert out.shape == (N, C2, H, W), out.shape
        ref = jax.block_until_ready(_ref_forward(x, params))
        err = float(jnp.max(jnp.abs(out - ref)))
        # bf16 HBM residency + bf16 MXU inputs (f32 accumulation) -> loosened tolerance.
        assert jnp.allclose(out, ref, atol=1e-1, rtol=5e-2), f"max abs err={err}"
        return err

    run_case(k1, k2, N=2, C1=4, H=16, W=16, C2=16, n=1)    # small-channel (c=8) path
    run_case(k3, k4, N=1, C1=16, H=8, W=8, C2=256, n=1)    # lane-dense (c=128) big-K path

    print("KERNEL_OK")
</pallas_src>

<mosaic_0001>
module attributes {stable_mosaic.version = 11 : i64} {
  func.func @kernel(%arg0: i32, %arg1: i32, %arg2: memref<1x256x4xbf16, #tpu.memory_space<vmem>>, %arg3: memref<4x16xbf16, #tpu.memory_space<vmem>>, %arg4: memref<1x16xf32, #tpu.memory_space<vmem>>, %arg5: memref<1x256x8xbf16, #tpu.memory_space<vmem>>, %arg6: memref<1x256x8xbf16, #tpu.memory_space<vmem>>, %arg7: memref<1x1x1x16xf32, #tpu.memory_space<vmem>>, %arg8: memref<1x1x1x16xf32, #tpu.memory_space<vmem>>) attributes {dimension_semantics = [#tpu.dimension_semantics<parallel>, #tpu.dimension_semantics<parallel>], iteration_bounds = array<i64: 2, 1>, scalar_prefetch = 0 : i64, scratch_operands = 0 : i64, tpu.core_type = #tpu.core_type<tc>, window_params = [{transform_indices = @transform_0, window_bounds = array<i64: 1, 256, 4>}, {pipeline_mode = #tpu.pipeline_mode<synchronous>, transform_indices = @transform_1, window_bounds = array<i64: 4, 16>}, {pipeline_mode = #tpu.pipeline_mode<synchronous>, transform_indices = @transform_2, window_bounds = array<i64: 1, 16>}, {transform_indices = @transform_3, window_bounds = array<i64: 1, 256, 8>}, {transform_indices = @transform_4, window_bounds = array<i64: 1, 256, 8>}, {transform_indices = @transform_5, window_bounds = array<i64: 1, 1, 1, 16>}, {transform_indices = @transform_6, window_bounds = array<i64: 1, 1, 1, 16>}]} {
    %c0 = arith.constant 0 : index
    %c0_0 = arith.constant 0 : index
    %c0_1 = arith.constant 0 : index
    %0 = vector.load %arg2[%c0, %c0_0, %c0_1] : memref<1x256x4xbf16, #tpu.memory_space<vmem>>, vector<1x256x4xbf16>
    %1 = vector.shape_cast %0 : vector<1x256x4xbf16> to vector<256x4xbf16>
    %c0_2 = arith.constant 0 : index
    %c0_3 = arith.constant 0 : index
    %2 = vector.load %arg3[%c0_2, %c0_3] : memref<4x16xbf16, #tpu.memory_space<vmem>>, vector<4x16xbf16>
    %cst = arith.constant dense<0.000000e+00> : vector<256x16xf32>
    %3 = tpu.matmul %1, %2, %cst {dimension_numbers = #tpu.dot_dimension_numbers<[1], [0], [0], [1], [0, 0, 1, 1], [], []>} : vector<256x4xbf16>, vector<4x16xbf16>, vector<256x16xf32> -> vector<256x16xf32>
    %c0_4 = arith.constant 0 : index
    %c0_5 = arith.constant 0 : index
    %4 = vector.load %arg4[%c0_4, %c0_5] : memref<1x16xf32, #tpu.memory_space<vmem>>, vector<1x16xf32>
    %5 = vector.broadcast %4 : vector<1x16xf32> to vector<256x16xf32>
    %6 = arith.addf %3, %5 : vector<256x16xf32>
    %7 = arith.negf %6 : vector<256x16xf32>
    %8 = math.exp %7 : vector<256x16xf32>
    %cst_6 = arith.constant 1.000000e+00 : f32
    %9 = vector.broadcast %cst_6 : f32 to vector<256x16xf32>
    %10 = arith.addf %9, %8 : vector<256x16xf32>
    %11 = arith.divf %9, %10 : vector<256x16xf32>
    %12 = arith.mulf %6, %11 : vector<256x16xf32>
    %13 = vector.extract_strided_slice %12 {offsets = [0, 0], sizes = [256, 8], strides = [1, 1]} : vector<256x16xf32> to vector<256x8xf32>
    %14 = arith.truncf %13 : vector<256x8xf32> to vector<256x8xbf16>
    %c0_7 = arith.constant 0 : index
    %c0_8 = arith.constant 0 : index
    %c0_9 = arith.constant 0 : index
    %15 = vector.load %arg5[%c0_7, %c0_8, %c0_9] : memref<1x256x8xbf16, #tpu.memory_space<vmem>>, vector<1x256x8xbf16>
    %16 = vector.shape_cast %15 : vector<1x256x8xbf16> to vector<256x8xbf16>
    %17 = vector.shape_cast %14 : vector<256x8xbf16> to vector<1x256x8xbf16>
    tpu.vector_store %arg5[%c0_7, %c0_8, %c0_9], %17 {strides = array<i32>} : memref<1x256x8xbf16, #tpu.memory_space<vmem>>, vector<1x256x8xbf16>,
    %18 = vector.extract_strided_slice %12 {offsets = [0, 8], sizes = [256, 8], strides = [1, 1]} : vector<256x16xf32> to vector<256x8xf32>
    %19 = arith.truncf %18 : vector<256x8xf32> to vector<256x8xbf16>
    %c0_10 = arith.constant 0 : index
    %c0_11 = arith.constant 0 : index
    %c0_12 = arith.constant 0 : index
    %20 = vector.load %arg6[%c0_10, %c0_11, %c0_12] : memref<1x256x8xbf16, #tpu.memory_space<vmem>>, vector<1x256x8xbf16>
    %21 = vector.shape_cast %20 : vector<1x256x8xbf16> to vector<256x8xbf16>
    %22 = vector.shape_cast %19 : vector<256x8xbf16> to vector<1x256x8xbf16>
    tpu.vector_store %arg6[%c0_10, %c0_11, %c0_12], %22 {strides = array<i32>} : memref<1x256x8xbf16, #tpu.memory_space<vmem>>, vector<1x256x8xbf16>,
    %cst_13 = arith.constant dense<0.000000e+00> : vector<16xf32>
    %23 = vector.multi_reduction <add>, %12, %cst_13 [0] : vector<256x16xf32> to vector<16xf32>
    %24 = vector.shape_cast %23 : vector<16xf32> to vector<1x16xf32>
    %25 = vector.shape_cast %24 : vector<1x16xf32> to vector<1x1x1x16xf32>
    %c0_14 = arith.constant 0 : index
    %c0_15 = arith.constant 0 : index
    %c0_16 = arith.constant 0 : index
    %c0_17 = arith.constant 0 : index
    %26 = vector.load %arg7[%c0_14, %c0_15, %c0_16, %c0_17] : memref<1x1x1x16xf32, #tpu.memory_space<vmem>>, vector<1x1x1x16xf32>
    tpu.vector_store %arg7[%c0_14, %c0_15, %c0_16, %c0_17], %25 {strides = array<i32>} : memref<1x1x1x16xf32, #tpu.memory_space<vmem>>, vector<1x1x1x16xf32>,
    %cst_18 = arith.constant dense<0xFF800000> : vector<16xf32>
    %27 = vector.multi_reduction <maximumf>, %12, %cst_18 [0] : vector<256x16xf32> to vector<16xf32>
    %28 = vector.shape_cast %27 : vector<16xf32> to vector<1x16xf32>
    %29 = vector.shape_cast %28 : vector<1x16xf32> to vector<1x1x1x16xf32>
    %c0_19 = arith.constant 0 : index
    %c0_20 = arith.constant 0 : index
    %c0_21 = arith.constant 0 : index
    %c0_22 = arith.constant 0 : index
    %30 = vector.load %arg8[%c0_19, %c0_20, %c0_21, %c0_22] : memref<1x1x1x16xf32, #tpu.memory_space<vmem>>, vector<1x1x1x16xf32>
    tpu.vector_store %arg8[%c0_19, %c0_20, %c0_21, %c0_22], %29 {strides = array<i32>} : memref<1x1x1x16xf32, #tpu.memory_space<vmem>>, vector<1x1x1x16xf32>,
    return
  }
  func.func @transform_0(%arg0: i32, %arg1: i32) -> (i32, i32, i32) {
    %c0_i32 = arith.constant 0 : i32
    %c0_i32_0 = arith.constant 0 : i32
    return %arg0, %arg1, %c0_i32 : i32, i32, i32
  }
  func.func @transform_1(%arg0: i32, %arg1: i32) -> (i32, i32) {
    %c0_i32 = arith.constant 0 : i32
    %c0_i32_0 = arith.constant 0 : i32
    %c0_i32_1 = arith.constant 0 : i32
    return %c0_i32, %c0_i32_0 : i32, i32
  }
  func.func @transform_2(%arg0: i32, %arg1: i32) -> (i32, i32) {
    %c0_i32 = arith.constant 0 : i32
    %c0_i32_0 = arith.constant 0 : i32
    %c0_i32_1 = arith.constant 0 : i32
    return %c0_i32, %c0_i32_0 : i32, i32
  }
  func.func @transform_3(%arg0: i32, %arg1: i32) -> (i32, i32, i32) {
    %c0_i32 = arith.constant 0 : i32
    %c0_i32_0 = arith.constant 0 : i32
    return %arg0, %arg1, %c0_i32 : i32, i32, i32
  }
  func.func @transform_4(%arg0: i32, %arg1: i32) -> (i32, i32, i32) {
    %c0_i32 = arith.constant 0 : i32
    %c0_i32_0 = arith.constant 0 : i32
    return %arg0, %arg1, %c0_i32 : i32, i32, i32
  }
  func.func @transform_5(%arg0: i32, %arg1: i32) -> (i32, i32, i32, i32) {
    %c0_i32 = arith.constant 0 : i32
    %c0_i32_0 = arith.constant 0 : i32
    %c0_i32_1 = arith.constant 0 : i32
    return %arg0, %arg1, %c0_i32, %c0_i32_0 : i32, i32, i32, i32
  }
  func.func @transform_6(%arg0: i32, %arg1: i32) -> (i32, i32, i32, i32) {
    %c0_i32 = arith.constant 0 : i32
    %c0_i32_0 = arith.constant 0 : i32
    %c0_i32_1 = arith.constant 0 : i32
    return %arg0, %arg1, %c0_i32, %c0_i32_0 : i32, i32, i32, i32
  }
}

</mosaic_0001>

<llo_original>
// kernel: tpu_custom_call.1
$region0: #{tpu_custom_call.1}
  #allocation0 [shape = 'u32[]', space=smem, size = 0x4, offset = 0x4, fixed_abs, tag = 'smem constant byte address 0x4 - core index']
  #allocation1 [shape = 'u32[144,128]{1,0:T(1,128)}', space=vmem, size = 0x12000, scoped, tag = 'internal scratch']
  %s0 = inlined_call_operand.vmem [shape: bf16[2,256,4], index: 0, kind: input, shape index: {}]
  %s1 = inlined_call_operand.vmem [shape: bf16[4,16], index: 1, kind: input, shape index: {}]
  %s2 = inlined_call_operand.vmem [shape: f32[1,16], index: 2, kind: input, shape index: {}]
  %s3 = inlined_call_operand.vmem [shape: bf16[2,256,8], index: 3, kind: output, shape index: {0}]
  %s4 = inlined_call_operand.vmem [shape: bf16[2,256,8], index: 4, kind: output, shape index: {1}]
  %s5 = inlined_call_operand.hbm [shape: f32[2,1,1,16], index: 5, kind: output, shape index: {2}]
  %s6 = inlined_call_operand.hbm [shape: f32[2,1,1,16], index: 6, kind: output, shape index: {3}]
  %7 = xla_tuple %s3, %s4, %s5, %s6
  %s8 = sld [smem:[#allocation0]]
  $region69: #{tpu_custom_call.1} parent=0
    _
  %s10 = ssub.s32 1, %s8
  %s11 = scalar_select 0, %s10, %s8
  $region1: #{tpu_custom_call.1} parent=0
    #allocation2 [shape = 'u8[1024]{0}', space=vmem, size = 0x400, scoped, tag = 'output window, operand 2']
    #allocation3 [shape = 's32[2]{0}', space=sflag, size = 0x8, scoped, tag = 'scoped memory for tpu_custom_call.1']
    #allocation4 [shape = 'u8[1024]{0}', space=vmem, size = 0x400, scoped, tag = 'output window, operand 3']
    #allocation5 [shape = 's32[2]{0}', space=sflag, size = 0x8, scoped, tag = 'scoped memory for tpu_custom_call.1']
    %12 = vsyncpa [#allocation3], 0
    %s13 = scalar_lea.sflag [#allocation3], 1
    %14 = vsyncpa %s13, 0
    %15 = vsyncpa [#allocation5], 0
    %s16 = scalar_lea.sflag [#allocation5], 1
    %17 = vsyncpa %s16, 0
    loop: start=0, step=1, limit=4
    $region2: #{tpu_custom_call.1} parent=1 // loop_pre_header
      _
    $region3: #{tpu_custom_call.1} parent=1 // loop_header
      %s19 = sphi 0, %s23
      %p20 = scmp.ge.s32.totalorder %s19, 4
      %s26 = sphi 0, %s38
      %s27 = sphi 0, %s34
      %s28 = sphi 0, %s26
      %s29 = sphi 0, %s27
      %s30 = sphi 0, %s28
      %s31 = sphi 0, %s29
      %s43 = sphi 0, %s45
      %s46 = sphi 0, %s43
      %s47 = sphi 0, %s46
      %s63 = sphi 0, %s47
      %s67 = sphi 0, %s67
      %s69 = sphi 0, %s67
      %s70 = sphi 0, %s69
      %s84 = sphi 0, %s70
      %s88 = sphi 0, %s88
      %s90 = sphi 0, %s88
      %s91 = sphi 0, %s90
      %s105 = sphi 0, %s91
      %s113 = sphi 0, %s115
      %s116 = sphi 0, %s113
      %s117 = sphi 0, %s116
      %s133 = sphi 0, %s117
      %s141 = sphi 0, %s143
      %s144 = sphi 0, %s141
      %s145 = sphi 0, %s144
      %s161 = sphi 0, %s145
      %s169 = sphi 0, %s171
      %s172 = sphi 0, %s169
      %s173 = sphi 0, %s172
      %s189 = sphi 0, %s173
      %s197 = sphi 0, %s199
      %s200 = sphi 0, %s197
      %s201 = sphi 0, %s200
      %s217 = sphi 0, %s201
    $region4: #{tpu_custom_call.1} parent=1 // loop_header_branch
      %22 = sbr.rel (%p20) target = $region8
    $region5: #{tpu_custom_call.1} parent=1 // loop_body
      %s24 = ssub.s32 %s19, 1
      %s25 = ssub.s32 %s19, 2
      %s32 = sadd.s32 1, %s27
      %p33 = scmp.ge.s32.totalorder %s32, 1
      %s34 = scalar_select %p33, 0, %s32
      %s35 = sadd.s32 1, %s26
      %s36 = scalar_select %p33, %s35, %s26
      %p37 = scmp.ge.s32.totalorder %s36, 2
      %s38 = scalar_select %p37, 0, %s36
      %s39 = ssub.s32 %s26, %s38
      %s40 = ssub.s32 %s27, %s34
      %s41 = sor.u32 %s39, %s40
      %p42 = scmp.eq.s32.totalorder %s41, 0
      %s44 = sadd.s32 %s43, 1
      %s45 = scalar_select %p42, %s43, %s44
      %p48 = pneg %p42
      %p49 = scmp.eq.s32.totalorder %s19, 1
      %p50 = por %p48, %p49
      %p51 = scmp.ne.s32.totalorder %s43, %s46
      %p52 = scmp.eq.s32.totalorder %s19, 0
      %p53 = por %p51, %p52
      %p54 = scmp.ne.s32.totalorder %s43, %s46
      %p55 = scmp.eq.s32.totalorder %s24, 1
      %p56 = por %p54, %p55
      %p57 = scmp.ne.s32.totalorder %s46, %s47
      %p58 = scmp.eq.s32.totalorder %s24, 0
      %p59 = por %p57, %p58
      %p60 = scmp.ne.s32.totalorder %s46, %s47
      %p61 = scmp.eq.s32.totalorder %s25, 1
      %p62 = por %p60, %p61
      %p64 = scmp.ne.s32.totalorder %s47, %s63
      %p65 = scmp.eq.s32.totalorder %s25, 0
      %p66 = por %p64, %p65
      %s68 = sadd.s32 %s67, 1
      %p71 = scmp.eq.s32.totalorder %s19, 1
      %p72 = scmp.ne.s32.totalorder %s67, %s69
      %p73 = scmp.eq.s32.totalorder %s19, 0
      %p74 = por %p72, %p73
      %p75 = scmp.ne.s32.totalorder %s67, %s69
      %p76 = scmp.eq.s32.totalorder %s24, 1
      %p77 = por %p75, %p76
      %p78 = scmp.ne.s32.totalorder %s69, %s70
      %p79 = scmp.eq.s32.totalorder %s24, 0
      %p80 = por %p78, %p79
      %p81 = scmp.ne.s32.totalorder %s69, %s70
      %p82 = scmp.eq.s32.totalorder %s25, 1
      %p83 = por %p81, %p82
      %p85 = scmp.ne.s32.totalorder %s70, %s84
      %p86 = scmp.eq.s32.totalorder %s25, 0
      %p87 = por %p85, %p86
      %s89 = sadd.s32 %s88, 1
      %p92 = scmp.eq.s32.totalorder %s19, 1
      %p93 = scmp.ne.s32.totalorder %s88, %s90
      %p94 = scmp.eq.s32.totalorder %s19, 0
      %p95 = por %p93, %p94
      %p96 = scmp.ne.s32.totalorder %s88, %s90
      %p97 = scmp.eq.s32.totalorder %s24, 1
      %p98 = por %p96, %p97
      %p99 = scmp.ne.s32.totalorder %s90, %s91
      %p100 = scmp.eq.s32.totalorder %s24, 0
      %p101 = por %p99, %p100
      %p102 = scmp.ne.s32.totalorder %s90, %s91
      %p103 = scmp.eq.s32.totalorder %s25, 1
      %p104 = por %p102, %p103
      %p106 = scmp.ne.s32.totalorder %s91, %s105
      %p107 = scmp.eq.s32.totalorder %s25, 0
      %p108 = por %p106, %p107
      %s109 = ssub.s32 %s26, %s38
      %s110 = ssub.s32 %s27, %s34
      %s111 = sor.u32 %s109, %s110
      %p112 = scmp.eq.s32.totalorder %s111, 0
      %s114 = sadd.s32 %s113, 1
      %s115 = scalar_select %p112, %s113, %s114
      %p118 = pneg %p112
      %p119 = scmp.eq.s32.totalorder %s19, 1
      %p120 = por %p118, %p119
      %p121 = scmp.ne.s32.totalorder %s113, %s116
      %p122 = scmp.eq.s32.totalorder %s19, 0
      %p123 = por %p121, %p122
      %p124 = scmp.ne.s32.totalorder %s113, %s116
      %p125 = scmp.eq.s32.totalorder %s24, 1
      %p126 = por %p124, %p125
      %p127 = scmp.ne.s32.totalorder %s116, %s117
      %p128 = scmp.eq.s32.totalorder %s24, 0
      %p129 = por %p127, %p128
      %p130 = scmp.ne.s32.totalorder %s116, %s117
      %p131 = scmp.eq.s32.totalorder %s25, 1
      %p132 = por %p130, %p131
      %p134 = scmp.ne.s32.totalorder %s117, %s133
      %p135 = scmp.eq.s32.totalorder %s25, 0
      %p136 = por %p134, %p135
      %s137 = ssub.s32 %s26, %s38
      %s138 = ssub.s32 %s27, %s34
      %s139 = sor.u32 %s137, %s138
      %p140 = scmp.eq.s32.totalorder %s139, 0
      %s142 = sadd.s32 %s141, 1
      %s143 = scalar_select %p140, %s141, %s142
      %p146 = pneg %p140
      %p147 = scmp.eq.s32.totalorder %s19, 1
      %p148 = por %p146, %p147
      %p149 = scmp.ne.s32.totalorder %s141, %s144
      %p150 = scmp.eq.s32.totalorder %s19, 0
      %p151 = por %p149, %p150
      %p152 = scmp.ne.s32.totalorder %s141, %s144
      %p153 = scmp.eq.s32.totalorder %s24, 1
      %p154 = por %p152, %p153
      %p155 = scmp.ne.s32.totalorder %s144, %s145
      %p156 = scmp.eq.s32.totalorder %s24, 0
      %p157 = por %p155, %p156
      %p158 = scmp.ne.s32.totalorder %s144, %s145
      %p159 = scmp.eq.s32.totalorder %s25, 1
      %p160 = por %p158, %p159
      %p162 = scmp.ne.s32.totalorder %s145, %s161
      %p163 = scmp.eq.s32.totalorder %s25, 0
      %p164 = por %p162, %p163
      %s165 = ssub.s32 %s26, %s38
      %s166 = ssub.s32 %s27, %s34
      %s167 = sor.u32 %s165, %s166
      %p168 = scmp.eq.s32.totalorder %s167, 0
      %s170 = sadd.s32 %s169, 1
      %s171 = scalar_select %p168, %s169, %s170
      %p174 = pneg %p168
      %p175 = scmp.eq.s32.totalorder %s19, 1
      %p176 = por %p174, %p175
      %p177 = scmp.ne.s32.totalorder %s169, %s172
      %p178 = scmp.eq.s32.totalorder %s19, 0
      %p179 = por %p177, %p178
      %p180 = scmp.ne.s32.totalorder %s169, %s172
      %p181 = scmp.eq.s32.totalorder %s24, 1
      %p182 = por %p180, %p181
      %p183 = scmp.ne.s32.totalorder %s172, %s173
      %p184 = scmp.eq.s32.totalorder %s24, 0
      %p185 = por %p183, %p184
      %p186 = scmp.ne.s32.totalorder %s172, %s173
      %p187 = scmp.eq.s32.totalorder %s25, 1
      %p188 = por %p186, %p187
      %p190 = scmp.ne.s32.totalorder %s173, %s189
      %p191 = scmp.eq.s32.totalorder %s25, 0
      %p192 = por %p190, %p191
      %s193 = ssub.s32 %s26, %s38
      %s194 = ssub.s32 %s27, %s34
      %s195 = sor.u32 %s193, %s194
      %p196 = scmp.eq.s32.totalorder %s195, 0
      %s198 = sadd.s32 %s197, 1
      %s199 = scalar_select %p196, %s197, %s198
      %p202 = pneg %p196
      %p203 = scmp.eq.s32.totalorder %s19, 1
      %p204 = por %p202, %p203
      %p205 = scmp.ne.s32.totalorder %s197, %s200
      %p206 = scmp.eq.s32.totalorder %s19, 0
      %p207 = por %p205, %p206
      %p208 = scmp.ne.s32.totalorder %s197, %s200
      %p209 = scmp.eq.s32.totalorder %s24, 1
      %p210 = por %p208, %p209
      %p211 = scmp.ne.s32.totalorder %s200, %s201
      %p212 = scmp.eq.s32.totalorder %s24, 0
      %p213 = por %p211, %p212
      %p214 = scmp.ne.s32.totalorder %s200, %s201
      %p215 = scmp.eq.s32.totalorder %s25, 1
      %p216 = por %p214, %p215
      %p218 = scmp.ne.s32.totalorder %s201, %s217
      %p219 = scmp.eq.s32.totalorder %s25, 0
      %p220 = por %p218, %p219
      %p221 = scmp.le.s32.totalorder 1, %s19
      %p222 = scmp.lt.s32.totalorder %s19, 3
      %p223 = pnand %p221, %p222
      %p224 = pneg %p223
      // Predicated region
      $region9: #{tpu_custom_call.1} parent=5 // pred_check
        _
      $region10: #{tpu_custom_call.1} parent=5 // pred_check_branch
        %226 = sbr.rel (%p223) target = $region12
      $region11: #{tpu_custom_call.1} parent=5 // pred_region
        %s227 = ssub.s32 %s19, 1
        // Predicated region
        $region13: #{tpu_custom_call.1} parent=11 // pred_check
          %p228 = pneg %p80
        $region14: #{tpu_custom_call.1} parent=11 // pred_check_branch
          %230 = sbr.rel (%p228) target = $region16
        $region15: #{tpu_custom_call.1} parent=11 // pred_region
          _
        $region16: #{tpu_custom_call.1} parent=11 // pred_fallthru
          _
        // Predicated region
        $region17: #{tpu_custom_call.1} parent=11 // pred_check
          %p231 = pneg %p101
        $region18: #{tpu_custom_call.1} parent=11 // pred_check_branch
          %233 = sbr.rel (%p231) target = $region20
        $region19: #{tpu_custom_call.1} parent=11 // pred_region
          _
        $region20: #{tpu_custom_call.1} parent=11 // pred_fallthru
          _
      $region12: #{tpu_custom_call.1} parent=5 // pred_fallthru
        _
      %p234 = scmp.lt.s32.totalorder %s19, 2
      // Predicated region
      $region21: #{tpu_custom_call.1} parent=5 // pred_check
        %p235 = pneg %p234
      $region22: #{tpu_custom_call.1} parent=5 // pred_check_branch
        %237 = sbr.rel (%p235) target = $region24
      $region23: #{tpu_custom_call.1} parent=5 // pred_region
        // Predicated region
        $region25: #{tpu_custom_call.1} parent=23 // pred_check
          %p238 = pneg %p53
        $region26: #{tpu_custom_call.1} parent=23 // pred_check_branch
          %240 = sbr.rel (%p238) target = $region28
        $region27: #{tpu_custom_call.1} parent=23 // pred_region
          %s241 = smul.u32 32, %s27
          %p242 = scmp.lt.s32.totalorder %s26, 1
          %s243 = scalar_select %p242, %s26, 1
          %p244 = scmp.lt.s32.totalorder %s241, 31
          %s245 = scalar_select %p244, %s241, 31
          %s246 = smul.addr %s243, 32
          %s247 = sadd.s32 %s245, %s246
          %s248 = smul.addr %s247, 4
          %s249 = scalar_lea.vmem %s0, %s248
          %s250 = smul.u32 32, %s27
        $region28: #{tpu_custom_call.1} parent=23 // pred_fallthru
          _
      $region24: #{tpu_custom_call.1} parent=5 // pred_fallthru
        _
      %p251 = scmp.le.s32.totalorder 1, %s19
      %p252 = scmp.lt.s32.totalorder %s19, 3
      %p253 = pnand %p251, %p252
      %p254 = pneg %p253
      // Predicated region
      $region29: #{tpu_custom_call.1} parent=5 // pred_check
        _
      $region30: #{tpu_custom_call.1} parent=5 // pred_check_branch
        %256 = sbr.rel (%p253) target = $region32
      $region31: #{tpu_custom_call.1} parent=5 // pred_region
        %s257 = ssub.s32 %s19, 1
        %s258 = smul.u32 32, %s29
        %p259 = scmp.lt.s32.totalorder %s28, 1
        %s260 = scalar_select %p259, %s28, 1
        %p261 = scmp.lt.s32.totalorder %s258, 31
        %s262 = scalar_select %p261, %s258, 31
        %s263 = smul.addr %s260, 32
        %s264 = sadd.s32 %s262, %s263
        %s265 = smul.addr %s264, 4
        %s266 = scalar_lea.vmem %s0, %s265
        %p267 = pneg %p59
        %p268 = pneg %p56
        %p269 = pneg %p80
        %p270 = pneg %p77
        %p271 = pneg %p101
        %p272 = pneg %p98
        %p273 = pneg %p129
        %p274 = pneg %p126
        %s275 = smul.u32 32, %s29
        %p276 = scmp.lt.s32.totalorder %s28, 1
        %s277 = scalar_select %p276, %s28, 1
        %p278 = scmp.lt.s32.totalorder %s275, 31
        %s279 = scalar_select %p278, %s275, 31
        %s280 = smul.addr %s277, 32
        %s281 = sadd.s32 %s279, %s280
        %s282 = smul.addr %s281, 4
        %s283 = scalar_lea.vmem %s3, %s282
        %p284 = pneg %p157
        %p285 = pneg %p154
        %s286 = smul.u32 32, %s29
        %p287 = scmp.lt.s32.totalorder %s28, 1
        %s288 = scalar_select %p287, %s28, 1
        %p289 = scmp.lt.s32.totalorder %s286, 31
        %s290 = scalar_select %p289, %s286, 31
        %s291 = smul.addr %s288, 32
        %s292 = sadd.s32 %s290, %s291
        %s293 = smul.addr %s292, 4
        %s294 = scalar_lea.vmem %s4, %s293
        %p295 = pneg %p185
        %p296 = pneg %p182
        %s297 = sand.u32 %s172, 1
        %s298 = scalar_lea.sflag [#allocation3], %s297
        %s299 = sand.u32 %s172, 1
        %s300 = scalar_lea.vmem [#allocation2], %s299
        %p301 = pneg %p213
        %p302 = pneg %p210
        %s303 = sand.u32 %s200, 1
        %s304 = scalar_lea.sflag [#allocation5], %s303
        %s305 = sand.u32 %s200, 1
        %s306 = scalar_lea.vmem [#allocation4], %s305
        %s307 = smul.u32 32, %s29
        %p308 = scmp.lt.s32.totalorder %s28, 1
        %s309 = scalar_select %p308, %s28, 1
        %p310 = scmp.lt.s32.totalorder %s307, 31
        %s311 = scalar_select %p310, %s307, 31
        %s312 = smul.addr %s309, 32
        %s313 = sadd.s32 %s311, %s312
        %s314 = smul.addr %s313, 4
        %s315 = scalar_lea.vmem %s0, %s314
        %s316 = smul.u32 32, %s29
        %s317 = smul.u32 32, %s29
        %p318 = scmp.lt.s32.totalorder %s28, 1
        %s319 = scalar_select %p318, %s28, 1
        %p320 = scmp.lt.s32.totalorder %s317, 31
        %s321 = scalar_select %p320, %s317, 31
        %s322 = smul.addr %s319, 32
        %s323 = sadd.s32 %s321, %s322
        %s324 = smul.addr %s323, 4
        %s325 = scalar_lea.vmem %s3, %s324
        %s326 = smul.u32 32, %s29
        %s327 = smul.u32 32, %s29
        %p328 = scmp.lt.s32.totalorder %s28, 1
        %s329 = scalar_select %p328, %s28, 1
        %p330 = scmp.lt.s32.totalorder %s327, 31
        %s331 = scalar_select %p330, %s327, 31
        %s332 = smul.addr %s329, 32
        %s333 = sadd.s32 %s331, %s332
        %s334 = smul.addr %s333, 4
        %s335 = scalar_lea.vmem %s4, %s334
        %s336 = smul.u32 32, %s29
        %v338 = vld [vmem:[%s315] sm:$0xf]
        %v339 = vld [vmem:[%s315 + $0x4] sm:$0xf]
        %v340 = vld [vmem:[%s315 + $0x8] sm:$0xf]
        %v341 = vld [vmem:[%s315 + $0xc] sm:$0xf]
        %v342 = vld [vmem:[%s315 + $0x10] sm:$0xf]
        %v343 = vld [vmem:[%s315 + $0x14] sm:$0xf]
        %v344 = vld [vmem:[%s315 + $0x18] sm:$0xf]
        %v345 = vld [vmem:[%s315 + $0x1c] sm:$0xf]
        %v346 = vld [vmem:[%s315 + $0x20] sm:$0xf]
        %v347 = vld [vmem:[%s315 + $0x24] sm:$0xf]
        %v348 = vld [vmem:[%s315 + $0x28] sm:$0xf]
        %v349 = vld [vmem:[%s315 + $0x2c] sm:$0xf]
        %v350 = vld [vmem:[%s315 + $0x30] sm:$0xf]
        %v351 = vld [vmem:[%s315 + $0x34] sm:$0xf]
        %v352 = vld [vmem:[%s315 + $0x38] sm:$0xf]
        %v353 = vld [vmem:[%s315 + $0x3c] sm:$0xf]
        %v354 = vld [vmem:[%s315 + $0x40] sm:$0xf]
        %v355 = vld [vmem:[%s315 + $0x44] sm:$0xf]
        %v356 = vld [vmem:[%s315 + $0x48] sm:$0xf]
        %v357 = vld [vmem:[%s315 + $0x4c] sm:$0xf]
        %v358 = vld [vmem:[%s315 + $0x50] sm:$0xf]
        %v359 = vld [vmem:[%s315 + $0x54] sm:$0xf]
        %v360 = vld [vmem:[%s315 + $0x58] sm:$0xf]
        %v361 = vld [vmem:[%s315 + $0x5c] sm:$0xf]
        %v362 = vld [vmem:[%s315 + $0x60] sm:$0xf]
        %v363 = vld [vmem:[%s315 + $0x64] sm:$0xf]
        %v364 = vld [vmem:[%s315 + $0x68] sm:$0xf]
        %v365 = vld [vmem:[%s315 + $0x6c] sm:$0xf]
        %v366 = vld [vmem:[%s315 + $0x70] sm:$0xf]
        %v367 = vld [vmem:[%s315 + $0x74] sm:$0xf]
        %v368 = vld [vmem:[%s315 + $0x78] sm:$0xf]
        %v369 = vld [vmem:[%s315 + $0x7c] sm:$0xf]
        %v370 = vld [vmem:[%s1] sm:$0x3]
        %v371 = vld [vmem:[%s2] sm:$0x1]
        %v373 = vlaneseq
        %v374 = vshrl.u32 %v373, 7
        %v375 = vsub.s32 0, %v374
        %v376 = vrot.slane %v371, %v375
        %v410 = vunpack.c.l.b16 %v338
        %v411 = vunpack.c.l.b16 %v339
        %v412 = vunpack.c.l.b16 %v340
        %v413 = vunpack.c.l.b16 %v341
        %v414 = vunpack.c.l.b16 %v342
        %v415 = vunpack.c.l.b16 %v343
        %v416 = vunpack.c.l.b16 %v344
        %v417 = vunpack.c.l.b16 %v345
        %v418 = vunpack.c.l.b16 %v346
        %v419 = vunpack.c.l.b16 %v347
        %v420 = vunpack.c.l.b16 %v348
        %v421 = vunpack.c.l.b16 %v349
        %v422 = vunpack.c.l.b16 %v350
        %v423 = vunpack.c.l.b16 %v351
        %v424 = vunpack.c.l.b16 %v352
        %v425 = vunpack.c.l.b16 %v353
        %v426 = vunpack.c.l.b16 %v354
        %v427 = vunpack.c.l.b16 %v355
        %v428 = vunpack.c.l.b16 %v356
        %v429 = vunpack.c.l.b16 %v357
        %v430 = vunpack.c.l.b16 %v358
        %v431 = vunpack.c.l.b16 %v359
        %v432 = vunpack.c.l.b16 %v360
        %v433 = vunpack.c.l.b16 %v361
        %v434 = vunpack.c.l.b16 %v362
        %v435 = vunpack.c.l.b16 %v363
        %v436 = vunpack.c.l.b16 %v364
        %v437 = vunpack.c.l.b16 %v365
        %v438 = vunpack.c.l.b16 %v366
        %v439 = vunpack.c.l.b16 %v367
        %v440 = vunpack.c.l.b16 %v368
        %v441 = vunpack.c.l.b16 %v369
        %v442 = vpack.c.b16 %v411, %v410
        %v443 = vpack.c.b16 %v413, %v412
        %v444 = vpack.c.b16 %v415, %v414
        %v445 = vpack.c.b16 %v417, %v416
        %v446 = vpack.c.b16 %v419, %v418
        %v447 = vpack.c.b16 %v421, %v420
        %v448 = vpack.c.b16 %v423, %v422
        %v449 = vpack.c.b16 %v425, %v424
        %v450 = vpack.c.b16 %v427, %v426
        %v451 = vpack.c.b16 %v429, %v428
        %v452 = vpack.c.b16 %v431, %v430
        %v453 = vpack.c.b16 %v433, %v432
        %v454 = vpack.c.b16 %v435, %v434
        %v455 = vpack.c.b16 %v437, %v436
        %v456 = vpack.c.b16 %v439, %v438
        %v457 = vpack.c.b16 %v441, %v440
        %vm458 = vcmask 31744
        %v460 = vsel %vm458, %v442, 0
        %v463 = vsel %vm458, %v443, 0
        %v466 = vsel %vm458, %v444, 0
        %v469 = vsel %vm458, %v445, 0
        %v472 = vsel %vm458, %v446, 0
        %v475 = vsel %vm458, %v447, 0
        %v478 = vsel %vm458, %v448, 0
        %v481 = vsel %vm458, %v449, 0
        %v484 = vsel %vm458, %v450, 0
        %v487 = vsel %vm458, %v451, 0
        %v490 = vsel %vm458, %v452, 0
        %v493 = vsel %vm458, %v453, 0
        %v496 = vsel %vm458, %v454, 0
        %v499 = vsel %vm458, %v455, 0
        %v502 = vsel %vm458, %v456, 0
        %v505 = vsel %vm458, %v457, 0
        %vm507 = vcmask 1041408
        %v509 = vsel %vm507, %v370, 0
        %511 = vmatprep.subr.bf16.mxu0 0
        %512 = vmatpush1.bf16.msra.mxu0 %v509
        %513 = vmatprep.subr.bf16.mxu0 0
        %514 = vmatpush1.bf16.msra.mxu0 0
        %515 = vmatprep.subr.bf16.mxu0 0
        %516 = vmatpush1.bf16.msra.mxu0 0
        %517 = vmatprep.subr.bf16.mxu0 0
        %518 = vmatpush1.bf16.msra.mxu0 0
        %519 = vmatprep.subr.bf16.mxu0 0
        %520 = vmatpush1.bf16.msra.mxu0 0
        %521 = vmatprep.subr.bf16.mxu0 0
        %522 = vmatpush1.bf16.msra.mxu0 0
        %523 = vmatprep.subr.bf16.mxu0 0
        %524 = vmatpush1.bf16.msra.mxu0 0
        %525 = vmatprep.subr.bf16.mxu0 0
        %526 = vmatpush1.bf16.msra.mxu0 0
        %527 = vmatprep.subr.bf16.mxu0 0
        %528 = vmatpush1.bf16.msra.mxu0 0
        %529 = vmatprep.subr.bf16.mxu0 0
        %530 = vmatpush1.bf16.msra.mxu0 0
        %531 = vmatprep.subr.bf16.mxu0 0
        %532 = vmatpush1.bf16.msra.mxu0 0
        %533 = vmatprep.subr.bf16.mxu0 0
        %534 = vmatpush1.bf16.msra.mxu0 0
        %535 = vmatprep.subr.bf16.mxu0 0
        %536 = vmatpush1.bf16.msra.mxu0 0
        %537 = vmatprep.subr.bf16.mxu0 0
        %538 = vmatpush1.bf16.msra.mxu0 0
        %539 = vmatprep.subr.bf16.mxu0 0
        %540 = vmatpush1.bf16.msra.mxu0 0
        %541 = vmatprep.subr.bf16.mxu0 0
        %542 = vmatpush1.bf16.msra.mxu0 0
        %543 = vmatprep.mubr.bf16.mxu0 0
        %544 = vmatmul.mubr.bf16.gmra.mrb[0].mxu0 %v460
        %v545 = vpop.f32.mrb[0].mxu0
        %v546 = vadd.f32 %v376, %v545
        %v547 = vpop.f32.mrb[0].mxu0
        %v548 = vpop.f32.mrb[0].mxu0
        %v549 = vadd.f32 %v376, %v548
        %v550 = vpop.f32.mrb[0].mxu0
        %551 = vmatprep.mubr.bf16.mxu0 0
        %552 = vmatmul.mubr.bf16.gmra.mrb[0].mxu0 %v463
        %v553 = vpop.f32.mrb[0].mxu0
        %v554 = vadd.f32 %v376, %v553
        %v555 = vpop.f32.mrb[0].mxu0
        %v556 = vpop.f32.mrb[0].mxu0
        %v557 = vadd.f32 %v376, %v556
        %v558 = vpop.f32.mrb[0].mxu0
        %559 = vmatprep.mubr.bf16.mxu0 0
        %560 = vmatmul.mubr.bf16.gmra.mrb[0].mxu0 %v466
        %v561 = vpop.f32.mrb[0].mxu0
        %v562 = vadd.f32 %v376, %v561
        %v563 = vpop.f32.mrb[0].mxu0
        %v564 = vpop.f32.mrb[0].mxu0
        %v565 = vadd.f32 %v376, %v564
        %v566 = vpop.f32.mrb[0].mxu0
        %567 = vmatprep.mubr.bf16.mxu0 0
        %568 = vmatmul.mubr.bf16.gmra.mrb[0].mxu0 %v469
        %v569 = vpop.f32.mrb[0].mxu0
        %v570 = vadd.f32 %v376, %v569
        %v571 = vpop.f32.mrb[0].mxu0
        %v572 = vpop.f32.mrb[0].mxu0
        %v573 = vadd.f32 %v376, %v572
        %v574 = vpop.f32.mrb[0].mxu0
        %575 = vmatprep.mubr.bf16.mxu0 0
        %576 = vmatmul.mubr.bf16.gmra.mrb[0].mxu0 %v472
        %v577 = vpop.f32.mrb[0].mxu0
        %v578 = vadd.f32 %v376, %v577
        %v579 = vpop.f32.mrb[0].mxu0
        %v580 = vpop.f32.mrb[0].mxu0
        %v581 = vadd.f32 %v376, %v580
        %v582 = vpop.f32.mrb[0].mxu0
        %583 = vmatprep.mubr.bf16.mxu0 0
        %584 = vmatmul.mubr.bf16.gmra.mrb[0].mxu0 %v475
        %v585 = vpop.f32.mrb[0].mxu0
        %v586 = vadd.f32 %v376, %v585
        %v587 = vpop.f32.mrb[0].mxu0
        %v588 = vpop.f32.mrb[0].mxu0
        %v589 = vadd.f32 %v376, %v588
        %v590 = vpop.f32.mrb[0].mxu0
        %591 = vmatprep.mubr.bf16.mxu0 0
        %592 = vmatmul.mubr.bf16.gmra.mrb[0].mxu0 %v478
        %v593 = vpop.f32.mrb[0].mxu0
        %v594 = vadd.f32 %v376, %v593
        %v595 = vpop.f32.mrb[0].mxu0
        %v596 = vpop.f32.mrb[0].mxu0
        %v597 = vadd.f32 %v376, %v596
        %v598 = vpop.f32.mrb[0].mxu0
        %599 = vmatprep.mubr.bf16.mxu0 0
        %600 = vmatmul.mubr.bf16.gmra.mrb[0].mxu0 %v481
        %v601 = vpop.f32.mrb[0].mxu0
        %v602 = vadd.f32 %v376, %v601
        %v603 = vpop.f32.mrb[0].mxu0
        %v604 = vpop.f32.mrb[0].mxu0
        %v605 = vadd.f32 %v376, %v604
        %v606 = vpop.f32.mrb[0].mxu0
        %607 = vmatprep.mubr.bf16.mxu0 0
        %608 = vmatmul.mubr.bf16.gmra.mrb[0].mxu0 %v484
        %v609 = vpop.f32.mrb[0].mxu0
        %v610 = vadd.f32 %v376, %v609
        %v611 = vpop.f32.mrb[0].mxu0
        %v612 = vpop.f32.mrb[0].mxu0
        %v613 = vadd.f32 %v376, %v612
        %v614 = vpop.f32.mrb[0].mxu0
        %615 = vmatprep.mubr.bf16.mxu0 0
        %616 = vmatmul.mubr.bf16.gmra.mrb[0].mxu0 %v487
        %v617 = vpop.f32.mrb[0].mxu0
        %v618 = vadd.f32 %v376, %v617
        %v619 = vpop.f32.mrb[0].mxu0
        %v620 = vpop.f32.mrb[0].mxu0
        %v621 = vadd.f32 %v376, %v620
        %v622 = vpop.f32.mrb[0].mxu0
        %623 = vmatprep.mubr.bf16.mxu0 0
        %624 = vmatmul.mubr.bf16.gmra.mrb[0].mxu0 %v490
        %v625 = vpop.f32.mrb[0].mxu0
        %v626 = vadd.f32 %v376, %v625
        %v627 = vpop.f32.mrb[0].mxu0
        %v628 = vpop.f32.mrb[0].mxu0
        %v629 = vadd.f32 %v376, %v628
        %v630 = vpop.f32.mrb[0].mxu0
        %631 = vmatprep.mubr.bf16.mxu0 0
        %632 = vmatmul.mubr.bf16.gmra.mrb[0].mxu0 %v493
        %v633 = vpop.f32.mrb[0].mxu0
        %v634 = vadd.f32 %v376, %v633
        %v635 = vpop.f32.mrb[0].mxu0
        %v636 = vpop.f32.mrb[0].mxu0
        %v637 = vadd.f32 %v376, %v636
        %v638 = vpop.f32.mrb[0].mxu0
        %639 = vmatprep.mubr.bf16.mxu0 0
        %640 = vmatmul.mubr.bf16.gmra.mrb[0].mxu0 %v496
        %v641 = vpop.f32.mrb[0].mxu0
        %v642 = vadd.f32 %v376, %v641
        %v643 = vpop.f32.mrb[0].mxu0
        %v644 = vpop.f32.mrb[0].mxu0
        %v645 = vadd.f32 %v376, %v644
        %v646 = vpop.f32.mrb[0].mxu0
        %647 = vmatprep.mubr.bf16.mxu0 0
        %648 = vmatmul.mubr.bf16.gmra.mrb[0].mxu0 %v499
        %v649 = vpop.f32.mrb[0].mxu0
        %v650 = vadd.f32 %v376, %v649
        %v651 = vpop.f32.mrb[0].mxu0
        %v652 = vpop.f32.mrb[0].mxu0
        %v653 = vadd.f32 %v376, %v652
        %v654 = vpop.f32.mrb[0].mxu0
        %655 = vmatprep.mubr.bf16.mxu0 0
        %656 = vmatmul.mubr.bf16.gmra.mrb[0].mxu0 %v502
        %v657 = vpop.f32.mrb[0].mxu0
        %v658 = vadd.f32 %v376, %v657
        %v659 = vpop.f32.mrb[0].mxu0
        %v660 = vpop.f32.mrb[0].mxu0
        %v661 = vadd.f32 %v376, %v660
        %v662 = vpop.f32.mrb[0].mxu0
        %663 = vmatprep.mubr.bf16.mxu0 0
        %664 = vmatmul.mubr.bf16.gmra.mrb[0].mxu0 %v505
        %v665 = vpop.f32.mrb[0].mxu0
        %v666 = vadd.f32 %v376, %v665
        %v667 = vpop.f32.mrb[0].mxu0
        %v668 = vpop.f32.mrb[0].mxu0
        %v669 = vadd.f32 %v376, %v668
        %v670 = vpop.f32.mrb[0].mxu0
        %671 = vdwg.mxu0
        %v672 = vxor.u32 %v546, 2147483648
        %v673 = vxor.u32 %v549, 2147483648
        %v674 = vxor.u32 %v554, 2147483648
        %v675 = vxor.u32 %v557, 2147483648
        %v676 = vxor.u32 %v562, 2147483648
        %v677 = vxor.u32 %v565, 2147483648
        %v678 = vxor.u32 %v570, 2147483648
        %v679 = vxor.u32 %v573, 2147483648
        %v680 = vxor.u32 %v578, 2147483648
        %v681 = vxor.u32 %v581, 2147483648
        %v682 = vxor.u32 %v586, 2147483648
        %v683 = vxor.u32 %v589, 2147483648
        %v684 = vxor.u32 %v594, 2147483648
        %v685 = vxor.u32 %v597, 2147483648
        %v686 = vxor.u32 %v602, 2147483648
        %v687 = vxor.u32 %v605, 2147483648
        %v688 = vxor.u32 %v610, 2147483648
        %v689 = vxor.u32 %v613, 2147483648
        %v690 = vxor.u32 %v618, 2147483648
        %v691 = vxor.u32 %v621, 2147483648
        %v692 = vxor.u32 %v626, 2147483648
        %v693 = vxor.u32 %v629, 2147483648
        %v694 = vxor.u32 %v634, 2147483648
        %v695 = vxor.u32 %v637, 2147483648
        %v696 = vxor.u32 %v642, 2147483648
        %v697 = vxor.u32 %v645, 2147483648
        %v698 = vxor.u32 %v650, 2147483648
        %v699 = vxor.u32 %v653, 2147483648
        %v700 = vxor.u32 %v658, 2147483648
        %v701 = vxor.u32 %v661, 2147483648
        %v702 = vxor.u32 %v666, 2147483648
        %v703 = vxor.u32 %v669, 2147483648
        %v704 = vmul.f32 %v672, 1.442695
        %v705 = vpow.pop %v704
        %v706 = vmul.f32 %v673, 1.442695
        %v707 = vpow.pop %v706
        %v708 = vmul.f32 %v674, 1.442695
        %v709 = vpow.pop %v708
        %v710 = vmul.f32 %v675, 1.442695
        %v711 = vpow.pop %v710
        %v712 = vmul.f32 %v676, 1.442695
        %v713 = vpow.pop %v712
        %v714 = vmul.f32 %v677, 1.442695
        %v715 = vpow.pop %v714
        %v716 = vmul.f32 %v678, 1.442695
        %v717 = vpow.pop %v716
        %v718 = vmul.f32 %v679, 1.442695
        %v719 = vpow.pop %v718
        %v720 = vmul.f32 %v680, 1.442695
        %v721 = vpow.pop %v720
        %v722 = vmul.f32 %v681, 1.442695
        %v723 = vpow.pop %v722
        %v724 = vmul.f32 %v682, 1.442695
        %v725 = vpow.pop %v724
        %v726 = vmul.f32 %v683, 1.442695
        %v727 = vpow.pop %v726
        %v728 = vmul.f32 %v684, 1.442695
        %v729 = vpow.pop %v728
        %v730 = vmul.f32 %v685, 1.442695
        %v731 = vpow.pop %v730
        %v732 = vmul.f32 %v686, 1.442695
        %v733 = vpow.pop %v732
        %v734 = vmul.f32 %v687, 1.442695
        %v735 = vpow.pop %v734
        %v736 = vmul.f32 %v688, 1.442695
        %v737 = vpow.pop %v736
        %v738 = vmul.f32 %v689, 1.442695
        %v739 = vpow.pop %v738
        %v740 = vmul.f32 %v690, 1.442695
        %v741 = vpow.pop %v740
        %v742 = vmul.f32 %v691, 1.442695
        %v743 = vpow.pop %v742
        %v744 = vmul.f32 %v692, 1.442695
        %v745 = vpow.pop %v744
        %v746 = vmul.f32 %v693, 1.442695
        %v747 = vpow.pop %v746
        %v748 = vmul.f32 %v694, 1.442695
        %v749 = vpow.pop %v748
        %v750 = vmul.f32 %v695, 1.442695
        %v751 = vpow.pop %v750
        %v752 = vmul.f32 %v696, 1.442695
        %v753 = vpow.pop %v752
        %v754 = vmul.f32 %v697, 1.442695
        %v755 = vpow.pop %v754
        %v756 = vmul.f32 %v698, 1.442695
        %v757 = vpow.pop %v756
        %v758 = vmul.f32 %v699, 1.442695
        %v759 = vpow.pop %v758
        %v760 = vmul.f32 %v700, 1.442695
        %v761 = vpow.pop %v760
        %v762 = vmul.f32 %v701, 1.442695
        %v763 = vpow.pop %v762
        %v764 = vmul.f32 %v702, 1.442695
        %v765 = vpow.pop %v764
        %v766 = vmul.f32 %v703, 1.442695
        %v767 = vpow.pop %v766
        %v768 = vadd.f32 %v705, 1.0
        %v769 = vadd.f32 %v707, 1.0
        %v770 = vadd.f32 %v709, 1.0
        %v771 = vadd.f32 %v711, 1.0
        %v772 = vadd.f32 %v713, 1.0
        %v773 = vadd.f32 %v715, 1.0
        %v774 = vadd.f32 %v717, 1.0
        %v775 = vadd.f32 %v719, 1.0
        %v776 = vadd.f32 %v721, 1.0
        %v777 = vadd.f32 %v723, 1.0
        %v778 = vadd.f32 %v725, 1.0
        %v779 = vadd.f32 %v727, 1.0
        %v780 = vadd.f32 %v729, 1.0
        %v781 = vadd.f32 %v731, 1.0
        %v782 = vadd.f32 %v733, 1.0
        %v783 = vadd.f32 %v735, 1.0
        %v784 = vadd.f32 %v737, 1.0
        %v785 = vadd.f32 %v739, 1.0
        %v786 = vadd.f32 %v741, 1.0
        %v787 = vadd.f32 %v743, 1.0
        %v788 = vadd.f32 %v745, 1.0
        %v789 = vadd.f32 %v747, 1.0
        %v790 = vadd.f32 %v749, 1.0
        %v791 = vadd.f32 %v751, 1.0
        %v792 = vadd.f32 %v753, 1.0
        %v793 = vadd.f32 %v755, 1.0
        %v794 = vadd.f32 %v757, 1.0
        %v795 = vadd.f32 %v759, 1.0
        %v796 = vadd.f32 %v761, 1.0
        %v797 = vadd.f32 %v763, 1.0
        %v798 = vadd.f32 %v765, 1.0
        %v799 = vadd.f32 %v767, 1.0
        %v800 = vrcp.pop %v768
        %v801 = vmul.f32 1.0, %v800
        %v802 = vrcp.pop %v769
        %v803 = vmul.f32 1.0, %v802
        %v804 = vrcp.pop %v770
        %v805 = vmul.f32 1.0, %v804
        %v806 = vrcp.pop %v771
        %v807 = vmul.f32 1.0, %v806
        %v808 = vrcp.pop %v772
        %v809 = vmul.f32 1.0, %v808
        %v810 = vrcp.pop %v773
        %v811 = vmul.f32 1.0, %v810
        %v812 = vrcp.pop %v774
        %v813 = vmul.f32 1.0, %v812
        %v814 = vrcp.pop %v775
        %v815 = vmul.f32 1.0, %v814
        %v816 = vrcp.pop %v776
        %v817 = vmul.f32 1.0, %v816
        %v818 = vrcp.pop %v777
        %v819 = vmul.f32 1.0, %v818
        %v820 = vrcp.pop %v778
        %v821 = vmul.f32 1.0, %v820
        %v822 = vrcp.pop %v779
        %v823 = vmul.f32 1.0, %v822
        %v824 = vrcp.pop %v780
        %v825 = vmul.f32 1.0, %v824
        %v826 = vrcp.pop %v781
        %v827 = vmul.f32 1.0, %v826
        %v828 = vrcp.pop %v782
        %v829 = vmul.f32 1.0, %v828
        %v830 = vrcp.pop %v783
        %v831 = vmul.f32 1.0, %v830
        %v832 = vrcp.pop %v784
        %v833 = vmul.f32 1.0, %v832
        %v834 = vrcp.pop %v785
        %v835 = vmul.f32 1.0, %v834
        %v836 = vrcp.pop %v786
        %v837 = vmul.f32 1.0, %v836
        %v838 = vrcp.pop %v787
        %v839 = vmul.f32 1.0, %v838
        %v840 = vrcp.pop %v788
        %v841 = vmul.f32 1.0, %v840
        %v842 = vrcp.pop %v789
        %v843 = vmul.f32 1.0, %v842
        %v844 = vrcp.pop %v790
        %v845 = vmul.f32 1.0, %v844
        %v846 = vrcp.pop %v791
        %v847 = vmul.f32 1.0, %v846
        %v848 = vrcp.pop %v792
        %v849 = vmul.f32 1.0, %v848
        %v850 = vrcp.pop %v793
        %v851 = vmul.f32 1.0, %v850
        %v852 = vrcp.pop %v794
        %v853 = vmul.f32 1.0, %v852
        %v854 = vrcp.pop %v795
        %v855 = vmul.f32 1.0, %v854
        %v856 = vrcp.pop %v796
        %v857 = vmul.f32 1.0, %v856
        %v858 = vrcp.pop %v797
        %v859 = vmul.f32 1.0, %v858
        %v860 = vrcp.pop %v798
        %v861 = vmul.f32 1.0, %v860
        %v862 = vrcp.pop %v799
        %v863 = vmul.f32 1.0, %v862
        %v864 = vmul.f32 %v546, %v801
        %v865 = vmul.f32 %v549, %v803
        %v866 = vmul.f32 %v554, %v805
        %v867 = vmul.f32 %v557, %v807
        %v868 = vmul.f32 %v562, %v809
        %v869 = vmul.f32 %v565, %v811
        %v870 = vmul.f32 %v570, %v813
        %v871 = vmul.f32 %v573, %v815
        %v872 = vmul.f32 %v578, %v817
        %v873 = vmul.f32 %v581, %v819
        %v874 = vmul.f32 %v586, %v821
        %v875 = vmul.f32 %v589, %v823
        %v876 = vmul.f32 %v594, %v825
        %v877 = vmul.f32 %v597, %v827
        %v878 = vmul.f32 %v602, %v829
        %v879 = vmul.f32 %v605, %v831
        %v880 = vmul.f32 %v610, %v833
        %v881 = vmul.f32 %v613, %v835
        %v882 = vmul.f32 %v618, %v837
        %v883 = vmul.f32 %v621, %v839
        %v884 = vmul.f32 %v626, %v841
        %v885 = vmul.f32 %v629, %v843
        %v886 = vmul.f32 %v634, %v845
        %v887 = vmul.f32 %v637, %v847
        %v888 = vmul.f32 %v642, %v849
        %v889 = vmul.f32 %v645, %v851
        %v890 = vmul.f32 %v650, %v853
        %v891 = vmul.f32 %v653, %v855
        %v892 = vmul.f32 %v658, %v857
        %v893 = vmul.f32 %v661, %v859
        %v894 = vmul.f32 %v666, %v861
        %v895 = vmul.f32 %v669, %v863
        %v896 = vpack.c.bf16 %v865, %v864
        %v897 = vpack.c.bf16 %v867, %v866
        %v898 = vpack.c.bf16 %v869, %v868
        %v899 = vpack.c.bf16 %v871, %v870
        %v900 = vpack.c.bf16 %v873, %v872
        %v901 = vpack.c.bf16 %v875, %v874
        %v902 = vpack.c.bf16 %v877, %v876
        %v903 = vpack.c.bf16 %v879, %v878
        %v904 = vpack.c.bf16 %v881, %v880
        %v905 = vpack.c.bf16 %v883, %v882
        %v906 = vpack.c.bf16 %v885, %v884
        %v907 = vpack.c.bf16 %v887, %v886
        %v908 = vpack.c.bf16 %v889, %v888
        %v909 = vpack.c.bf16 %v891, %v890
        %v910 = vpack.c.bf16 %v893, %v892
        %v911 = vpack.c.bf16 %v895, %v894
        %v928 = vunpack.c.l.b16 %v896
        %v929 = vunpack.c.h.b16 %v896
        %v930 = vunpack.c.l.b16 %v897
        %v931 = vunpack.c.h.b16 %v897
        %v932 = vunpack.c.l.b16 %v898
        %v933 = vunpack.c.h.b16 %v898
        %v934 = vunpack.c.l.b16 %v899
        %v935 = vunpack.c.h.b16 %v899
        %v936 = vunpack.c.l.b16 %v900
        %v937 = vunpack.c.h.b16 %v900
        %v938 = vunpack.c.l.b16 %v901
        %v939 = vunpack.c.h.b16 %v901
        %v940 = vunpack.c.l.b16 %v902
        %v941 = vunpack.c.h.b16 %v902
        %v942 = vunpack.c.l.b16 %v903
        %v943 = vunpack.c.h.b16 %v903
        %v944 = vunpack.c.l.b16 %v904
        %v945 = vunpack.c.h.b16 %v904
        %v946 = vunpack.c.l.b16 %v905
        %v947 = vunpack.c.h.b16 %v905
        %v948 = vunpack.c.l.b16 %v906
        %v949 = vunpack.c.h.b16 %v906
        %v950 = vunpack.c.l.b16 %v907
        %v951 = vunpack.c.h.b16 %v907
        %v952 = vunpack.c.l.b16 %v908
        %v953 = vunpack.c.h.b16 %v908
        %v954 = vunpack.c.l.b16 %v909
        %v955 = vunpack.c.h.b16 %v909
        %v956 = vunpack.c.l.b16 %v910
        %v957 = vunpack.c.h.b16 %v910
        %v958 = vunpack.c.l.b16 %v911
        %v959 = vunpack.c.h.b16 %v911
        %v960 = vpack.c.b16 %v928, %v928
        %v961 = vpack.c.b16 %v929, %v929
        %v962 = vpack.c.b16 %v930, %v930
        %v963 = vpack.c.b16 %v931, %v931
        %v964 = vpack.c.b16 %v932, %v932
        %v965 = vpack.c.b16 %v933, %v933
        %v966 = vpack.c.b16 %v934, %v934
        %v967 = vpack.c.b16 %v935, %v935
        %v968 = vpack.c.b16 %v936, %v936
        %v969 = vpack.c.b16 %v937, %v937
        %v970 = vpack.c.b16 %v938, %v938
        %v971 = vpack.c.b16 %v939, %v939
        %v972 = vpack.c.b16 %v940, %v940
        %v973 = vpack.c.b16 %v941, %v941
        %v974 = vpack.c.b16 %v942, %v942
        %v975 = vpack.c.b16 %v943, %v943
        %v976 = vpack.c.b16 %v944, %v944
        %v977 = vpack.c.b16 %v945, %v945
        %v978 = vpack.c.b16 %v946, %v946
        %v979 = vpack.c.b16 %v947, %v947
        %v980 = vpack.c.b16 %v948, %v948
        %v981 = vpack.c.b16 %v949, %v949
        %v982 = vpack.c.b16 %v950, %v950
        %v983 = vpack.c.b16 %v951, %v951
        %v984 = vpack.c.b16 %v952, %v952
        %v985 = vpack.c.b16 %v953, %v953
        %v986 = vpack.c.b16 %v954, %v954
        %v987 = vpack.c.b16 %v955, %v955
        %v988 = vpack.c.b16 %v956, %v956
        %v989 = vpack.c.b16 %v957, %v957
        %v990 = vpack.c.b16 %v958, %v958
        %v991 = vpack.c.b16 %v959, %v959
        %vm1024 = vcmask 60416
        %1025 = vst.msk [vmem:[%s325] sm:$0xf] %vm1024, %v960
        %1026 = vst.msk [vmem:[%s325 + $0x4] sm:$0xf] %vm1024, %v961
        %1027 = vst.msk [vmem:[%s325 + $0x8] sm:$0xf] %vm1024, %v962
        %1028 = vst.msk [vmem:[%s325 + $0xc] sm:$0xf] %vm1024, %v963
        %1029 = vst.msk [vmem:[%s325 + $0x10] sm:$0xf] %vm1024, %v964
        %1030 = vst.msk [vmem:[%s325 + $0x14] sm:$0xf] %vm1024, %v965
        %1031 = vst.msk [vmem:[%s325 + $0x18] sm:$0xf] %vm1024, %v966
        %1032 = vst.msk [vmem:[%s325 + $0x1c] sm:$0xf] %vm1024, %v967
        %1033 = vst.msk [vmem:[%s325 + $0x20] sm:$0xf] %vm1024, %v968
        %1034 = vst.msk [vmem:[%s325 + $0x24] sm:$0xf] %vm1024, %v969
        %1035 = vst.msk [vmem:[%s325 + $0x28] sm:$0xf] %vm1024, %v970
        %1036 = vst.msk [vmem:[%s325 + $0x2c] sm:$0xf] %vm1024, %v971
        %1037 = vst.msk [vmem:[%s325 + $0x30] sm:$0xf] %vm1024, %v972
        %1038 = vst.msk [vmem:[%s325 + $0x34] sm:$0xf] %vm1024, %v973
        %1039 = vst.msk [vmem:[%s325 + $0x38] sm:$0xf] %vm1024, %v974
        %1040 = vst.msk [vmem:[%s325 + $0x3c] sm:$0xf] %vm1024, %v975
        %1041 = vst.msk [vmem:[%s325 + $0x40] sm:$0xf] %vm1024, %v976
        %1042 = vst.msk [vmem:[%s325 + $0x44] sm:$0xf] %vm1024, %v977
        %1043 = vst.msk [vmem:[%s325 + $0x48] sm:$0xf] %vm1024, %v978
        %1044 = vst.msk [vmem:[%s325 + $0x4c] sm:$0xf] %vm1024, %v979
        %1045 = vst.msk [vmem:[%s325 + $0x50] sm:$0xf] %vm1024, %v980
        %1046 = vst.msk [vmem:[%s325 + $0x54] sm:$0xf] %vm1024, %v981
        %1047 = vst.msk [vmem:[%s325 + $0x58] sm:$0xf] %vm1024, %v982
        %1048 = vst.msk [vmem:[%s325 + $0x5c] sm:$0xf] %vm1024, %v983
        %1049 = vst.msk [vmem:[%s325 + $0x60] sm:$0xf] %vm1024, %v984
        %1050 = vst.msk [vmem:[%s325 + $0x64] sm:$0xf] %vm1024, %v985
        %1051 = vst.msk [vmem:[%s325 + $0x68] sm:$0xf] %vm1024, %v986
        %1052 = vst.msk [vmem:[%s325 + $0x6c] sm:$0xf] %vm1024, %v987
        %1053 = vst.msk [vmem:[%s325 + $0x70] sm:$0xf] %vm1024, %v988
        %1054 = vst.msk [vmem:[%s325 + $0x74] sm:$0xf] %vm1024, %v989
        %1055 = vst.msk [vmem:[%s325 + $0x78] sm:$0xf] %vm1024, %v990
        %1056 = vst.msk [vmem:[%s325 + $0x7c] sm:$0xf] %vm1024, %v991
        %1057 = vrot.lane.b32.xlu0 %v960, 120
        %v1058 = vpop.permute.xlu0 %1057
        %1059 = vrot.lane.b32.xlu0 %v961, 120
        %v1060 = vpop.permute.xlu0 %1059
        %1061 = vrot.lane.b32.xlu0 %v962, 120
        %v1062 = vpop.permute.xlu0 %1061
        %1063 = vrot.lane.b32.xlu0 %v963, 120
        %v1064 = vpop.permute.xlu0 %1063
        %1065 = vrot.lane.b32.xlu0 %v964, 120
        %v1066 = vpop.permute.xlu0 %1065
        %1067 = vrot.lane.b32.xlu0 %v965, 120
        %v1068 = vpop.permute.xlu0 %1067
        %1069 = vrot.lane.b32.xlu0 %v966, 120
        %v1070 = vpop.permute.xlu0 %1069
        %1071 = vrot.lane.b32.xlu0 %v967, 120
        %v1072 = vpop.permute.xlu0 %1071
        %1073 = vrot.lane.b32.xlu0 %v968, 120
        %v1074 = vpop.permute.xlu0 %1073
        %1075 = vrot.lane.b32.xlu0 %v969, 120
        %v1076 = vpop.permute.xlu0 %1075
        %1077 = vrot.lane.b32.xlu0 %v970, 120
        %v1078 = vpop.permute.xlu0 %1077
        %1079 = vrot.lane.b32.xlu0 %v971, 120
        %v1080 = vpop.permute.xlu0 %1079
        %1081 = vrot.lane.b32.xlu0 %v972, 120
        %v1082 = vpop.permute.xlu0 %1081
        %1083 = vrot.lane.b32.xlu0 %v973, 120
        %v1084 = vpop.permute.xlu0 %1083
        %1085 = vrot.lane.b32.xlu0 %v974, 120
        %v1086 = vpop.permute.xlu0 %1085
        %1087 = vrot.lane.b32.xlu0 %v975, 120
        %v1088 = vpop.permute.xlu0 %1087
        %1089 = vrot.lane.b32.xlu0 %v976, 120
        %v1090 = vpop.permute.xlu0 %1089
        %1091 = vrot.lane.b32.xlu0 %v977, 120
        %v1092 = vpop.permute.xlu0 %1091
        %1093 = vrot.lane.b32.xlu0 %v978, 120
        %v1094 = vpop.permute.xlu0 %1093
        %1095 = vrot.lane.b32.xlu0 %v979, 120
        %v1096 = vpop.permute.xlu0 %1095
        %1097 = vrot.lane.b32.xlu0 %v980, 120
        %v1098 = vpop.permute.xlu0 %1097
        %1099 = vrot.lane.b32.xlu0 %v981, 120
        %v1100 = vpop.permute.xlu0 %1099
        %1101 = vrot.lane.b32.xlu0 %v982, 120
        %v1102 = vpop.permute.xlu0 %1101
        %1103 = vrot.lane.b32.xlu0 %v983, 120
        %v1104 = vpop.permute.xlu0 %1103
        %1105 = vrot.lane.b32.xlu0 %v984, 120
        %v1106 = vpop.permute.xlu0 %1105
        %1107 = vrot.lane.b32.xlu0 %v985, 120
        %v1108 = vpop.permute.xlu0 %1107
        %1109 = vrot.lane.b32.xlu0 %v986, 120
        %v1110 = vpop.permute.xlu0 %1109
        %1111 = vrot.lane.b32.xlu0 %v987, 120
        %v1112 = vpop.permute.xlu0 %1111
        %1113 = vrot.lane.b32.xlu0 %v988, 120
        %v1114 = vpop.permute.xlu0 %1113
        %1115 = vrot.lane.b32.xlu0 %v989, 120
        %v1116 = vpop.permute.xlu0 %1115
        %1117 = vrot.lane.b32.xlu0 %v990, 120
        %v1118 = vpop.permute.xlu0 %1117
        %1119 = vrot.lane.b32.xlu0 %v991, 120
        %v1120 = vpop.permute.xlu0 %1119
        %1153 = vst.msk [vmem:[%s335] sm:$0xf] %vm1024, %v1058
        %1154 = vst.msk [vmem:[%s335 + $0x4] sm:$0xf] %vm1024, %v1060
        %1155 = vst.msk [vmem:[%s335 + $0x8] sm:$0xf] %vm1024, %v1062
        %1156 = vst.msk [vmem:[%s335 + $0xc] sm:$0xf] %vm1024, %v1064
        %1157 = vst.msk [vmem:[%s335 + $0x10] sm:$0xf] %vm1024, %v1066
        %1158 = vst.msk [vmem:[%s335 + $0x14] sm:$0xf] %vm1024, %v1068
        %1159 = vst.msk [vmem:[%s335 + $0x18] sm:$0xf] %vm1024, %v1070
        %1160 = vst.msk [vmem:[%s335 + $0x1c] sm:$0xf] %vm1024, %v1072
        %1161 = vst.msk [vmem:[%s335 + $0x20] sm:$0xf] %vm1024, %v1074
        %1162 = vst.msk [vmem:[%s335 + $0x24] sm:$0xf] %vm1024, %v1076
        %1163 = vst.msk [vmem:[%s335 + $0x28] sm:$0xf] %vm1024, %v1078
        %1164 = vst.msk [vmem:[%s335 + $0x2c] sm:$0xf] %vm1024, %v1080
        %1165 = vst.msk [vmem:[%s335 + $0x30] sm:$0xf] %vm1024, %v1082
        %1166 = vst.msk [vmem:[%s335 + $0x34] sm:$0xf] %vm1024, %v1084
        %1167 = vst.msk [vmem:[%s335 + $0x38] sm:$0xf] %vm1024, %v1086
        %1168 = vst.msk [vmem:[%s335 + $0x3c] sm:$0xf] %vm1024, %v1088
        %1169 = vst.msk [vmem:[%s335 + $0x40] sm:$0xf] %vm1024, %v1090
        %1170 = vst.msk [vmem:[%s335 + $0x44] sm:$0xf] %vm1024, %v1092
        %1171 = vst.msk [vmem:[%s335 + $0x48] sm:$0xf] %vm1024, %v1094
        %1172 = vst.msk [vmem:[%s335 + $0x4c] sm:$0xf] %vm1024, %v1096
        %1173 = vst.msk [vmem:[%s335 + $0x50] sm:$0xf] %vm1024, %v1098
        %1174 = vst.msk [vmem:[%s335 + $0x54] sm:$0xf] %vm1024, %v1100
        %1175 = vst.msk [vmem:[%s335 + $0x58] sm:$0xf] %vm1024, %v1102
        %1176 = vst.msk [vmem:[%s335 + $0x5c] sm:$0xf] %vm1024, %v1104
        %1177 = vst.msk [vmem:[%s335 + $0x60] sm:$0xf] %vm1024, %v1106
        %1178 = vst.msk [vmem:[%s335 + $0x64] sm:$0xf] %vm1024, %v1108
        %1179 = vst.msk [vmem:[%s335 + $0x68] sm:$0xf] %vm1024, %v1110
        %1180 = vst.msk [vmem:[%s335 + $0x6c] sm:$0xf] %vm1024, %v1112
        %1181 = vst.msk [vmem:[%s335 + $0x70] sm:$0xf] %vm1024, %v1114
        %1182 = vst.msk [vmem:[%s335 + $0x74] sm:$0xf] %vm1024, %v1116
        %1183 = vst.msk [vmem:[%s335 + $0x78] sm:$0xf] %vm1024, %v1118
        %1184 = vst.msk [vmem:[%s335 + $0x7c] sm:$0xf] %vm1024, %v1120
        %vm1185 = vcmask 130048
        %v1186 = vsel %vm1185, %v864, 0.0
        %v1187 = vsel %vm1185, %v865, 0.0
        %v1188 = vadd.f32 %v1186, %v1187
        %v1189 = vsel %vm1185, %v866, 0.0
        %v1190 = vadd.f32 %v1188, %v1189
        %v1191 = vsel %vm1185, %v867, 0.0
        %v1192 = vadd.f32 %v1190, %v1191
        %v1193 = vsel %vm1185, %v868, 0.0
        %v1194 = vadd.f32 %v1192, %v1193
        %v1195 = vsel %vm1185, %v869, 0.0
        %v1196 = vadd.f32 %v1194, %v1195
        %v1197 = vsel %vm1185, %v870, 0.0
        %v1198 = vadd.f32 %v1196, %v1197
        %v1199 = vsel %vm1185, %v871, 0.0
        %v1200 = vadd.f32 %v1198, %v1199
        %v1201 = vsel %vm1185, %v872, 0.0
        %v1202 = vadd.f32 %v1200, %v1201
        %v1203 = vsel %vm1185, %v873, 0.0
        %v1204 = vadd.f32 %v1202, %v1203
        %v1205 = vsel %vm1185, %v874, 0.0
        %v1206 = vadd.f32 %v1204, %v1205
        %v1207 = vsel %vm1185, %v875, 0.0
        %v1208 = vadd.f32 %v1206, %v1207
        %v1209 = vsel %vm1185, %v876, 0.0
        %v1210 = vadd.f32 %v1208, %v1209
        %v1211 = vsel %vm1185, %v877, 0.0
        %v1212 = vadd.f32 %v1210, %v1211
        %v1213 = vsel %vm1185, %v878, 0.0
        %v1214 = vadd.f32 %v1212, %v1213
        %v1215 = vsel %vm1185, %v879, 0.0
        %v1216 = vadd.f32 %v1214, %v1215
        %v1217 = vsel %vm1185, %v880, 0.0
        %v1218 = vadd.f32 %v1216, %v1217
        %v1219 = vsel %vm1185, %v881, 0.0
        %v1220 = vadd.f32 %v1218, %v1219
        %v1221 = vsel %vm1185, %v882, 0.0
        %v1222 = vadd.f32 %v1220, %v1221
        %v1223 = vsel %vm1185, %v883, 0.0
        %v1224 = vadd.f32 %v1222, %v1223
        %v1225 = vsel %vm1185, %v884, 0.0
        %v1226 = vadd.f32 %v1224, %v1225
        %v1227 = vsel %vm1185, %v885, 0.0
        %v1228 = vadd.f32 %v1226, %v1227
        %v1229 = vsel %vm1185, %v886, 0.0
        %v1230 = vadd.f32 %v1228, %v1229
        %v1231 = vsel %vm1185, %v887, 0.0
        %v1232 = vadd.f32 %v1230, %v1231
        %v1233 = vsel %vm1185, %v888, 0.0
        %v1234 = vadd.f32 %v1232, %v1233
        %v1235 = vsel %vm1185, %v889, 0.0
        %v1236 = vadd.f32 %v1234, %v1235
        %v1237 = vsel %vm1185, %v890, 0.0
        %v1238 = vadd.f32 %v1236, %v1237
        %v1239 = vsel %vm1185, %v891, 0.0
        %v1240 = vadd.f32 %v1238, %v1239
        %v1241 = vsel %vm1185, %v892, 0.0
        %v1242 = vadd.f32 %v1240, %v1241
        %v1243 = vsel %vm1185, %v893, 0.0
        %v1244 = vadd.f32 %v1242, %v1243
        %v1245 = vsel %vm1185, %v894, 0.0
        %v1246 = vadd.f32 %v1244, %v1245
        %v1247 = vsel %vm1185, %v895, 0.0
        %v1248 = vadd.f32 %v1246, %v1247
        %v1249 = vrot.slane %v1248, 4
        %v1250 = vadd.f32 %v1248, %v1249
        %v1251 = vrot.slane %v1250, 2
        %v1252 = vadd.f32 %v1250, %v1251
        %v1253 = vrot.slane %v1252, 1
        %v1254 = vadd.f32 %v1252, %v1253
        %vm1255 = vcmask 122880
        %1256 = vst.msk [vmem:[%s300] sm:$0x1] %vm1255, %v1254
        %v1257 = vsel %vm1185, %v864, -inf
        %v1258 = vsel %vm1185, %v865, -inf
        %v1259 = vsel %vm1185, %v866, -inf
        %v1260 = vsel %vm1185, %v867, -inf
        %v1261 = vsel %vm1185, %v868, -inf
        %v1262 = vmax.f32 %v1257, %v1261
        %v1263 = vsel %vm1185, %v869, -inf
        %v1264 = vmax.f32 %v1258, %v1263
        %v1265 = vsel %vm1185, %v870, -inf
        %v1266 = vmax.f32 %v1259, %v1265
        %v1267 = vsel %vm1185, %v871, -inf
        %v1268 = vmax.f32 %v1260, %v1267
        %v1269 = vsel %vm1185, %v872, -inf
        %v1270 = vmax.f32 %v1262, %v1269
        %v1271 = vsel %vm1185, %v873, -inf
        %v1272 = vmax.f32 %v1264, %v1271
        %v1273 = vsel %vm1185, %v874, -inf
        %v1274 = vmax.f32 %v1266, %v1273
        %v1275 = vsel %vm1185, %v875, -inf
        %v1276 = vmax.f32 %v1268, %v1275
        %v1277 = vsel %vm1185, %v876, -inf
        %v1278 = vmax.f32 %v1270, %v1277
        %v1279 = vsel %vm1185, %v877, -inf
        %v1280 = vmax.f32 %v1272, %v1279
        %v1281 = vsel %vm1185, %v878, -inf
        %v1282 = vmax.f32 %v1274, %v1281
        %v1283 = vsel %vm1185, %v879, -inf
        %v1284 = vmax.f32 %v1276, %v1283
        %v1285 = vsel %vm1185, %v880, -inf
        %v1286 = vmax.f32 %v1278, %v1285
        %v1287 = vsel %vm1185, %v881, -inf
        %v1288 = vmax.f32 %v1280, %v1287
        %v1289 = vsel %vm1185, %v882, -inf
        %v1290 = vmax.f32 %v1282, %v1289
        %v1291 = vsel %vm1185, %v883, -inf
        %v1292 = vmax.f32 %v1284, %v1291
        %v1293 = vsel %vm1185, %v884, -inf
        %v1294 = vmax.f32 %v1286, %v1293
        %v1295 = vsel %vm1185, %v885, -inf
        %v1296 = vmax.f32 %v1288, %v1295
        %v1297 = vsel %vm1185, %v886, -inf
        %v1298 = vmax.f32 %v1290, %v1297
        %v1299 = vsel %vm1185, %v887, -inf
        %v1300 = vmax.f32 %v1292, %v1299
        %v1301 = vsel %vm1185, %v888, -inf
        %v1302 = vmax.f32 %v1294, %v1301
        %v1303 = vsel %vm1185, %v889, -inf
        %v1304 = vmax.f32 %v1296, %v1303
        %v1305 = vsel %vm1185, %v890, -inf
        %v1306 = vmax.f32 %v1298, %v1305
        %v1307 = vsel %vm1185, %v891, -inf
        %v1308 = vmax.f32 %v1300, %v1307
        %v1309 = vsel %vm1185, %v892, -inf
        %v1310 = vmax.f32 %v1302, %v1309
        %v1311 = vsel %vm1185, %v893, -inf
        %v1312 = vmax.f32 %v1304, %v1311
        %v1313 = vsel %vm1185, %v894, -inf
        %v1314 = vmax.f32 %v1306, %v1313
        %v1315 = vsel %vm1185, %v895, -inf
        %v1316 = vmax.f32 %v1308, %v1315
        %v1317 = vmax.f32 %v1310, %v1312
        %v1318 = vmax.f32 %v1314, %v1316
        %v1319 = vmax.f32 %v1317, %v1318
        %v1320 = vrot.slane %v1319, 4
        %v1321 = vmax.f32 %v1319, %v1320
        %v1322 = vrot.slane %v1321, 2
        %v1323 = vmax.f32 %v1321, %v1322
        %v1324 = vrot.slane %v1323, 1
        %v1325 = vmax.f32 %v1323, %v1324
        %1326 = vst.msk [vmem:[%s306] sm:$0x1] %vm1255, %v1325
        %s1327 = smul.u32 32, %s29
        %p1328 = scmp.lt.s32.totalorder %s28, 1
        %s1329 = scalar_select %p1328, %s28, 1
        %p1330 = scmp.lt.s32.totalorder %s1327, 31
        %s1331 = scalar_select %p1330, %s1327, 31
        %s1332 = smul.addr %s1329, 32
        %s1333 = sadd.s32 %s1331, %s1332
        %s1334 = smul.addr %s1333, 4
        %s1335 = scalar_lea.vmem %s3, %s1334
        %s1336 = smul.u32 32, %s29
        %p1337 = scmp.lt.s32.totalorder %s28, 1
        %s1338 = scalar_select %p1337, %s28, 1
        %p1339 = scmp.lt.s32.totalorder %s1336, 31
        %s1340 = scalar_select %p1339, %s1336, 31
        %s1341 = smul.addr %s1338, 32
        %s1342 = sadd.s32 %s1340, %s1341
        %s1343 = smul.addr %s1342, 4
        %s1344 = scalar_lea.vmem %s4, %s1343
        %s1345 = sand.u32 %s172, 1
        %s1346 = scalar_lea.sflag [#allocation3], %s1345
        %s1347 = sand.u32 %s172, 1
        %s1348 = scalar_lea.vmem [#allocation2], %s1347
        %s1349 = sand.u32 %s200, 1
        %s1350 = scalar_lea.sflag [#allocation5], %s1349
        %s1351 = sand.u32 %s200, 1
        %s1352 = scalar_lea.vmem [#allocation4], %s1351
        // Predicated region
        $region33: #{tpu_custom_call.1} parent=31 // pred_check
          %p1353 = pneg %p126
        $region34: #{tpu_custom_call.1} parent=31 // pred_check_branch
          %1355 = sbr.rel (%p1353) target = $region36
        $region35: #{tpu_custom_call.1} parent=31 // pred_region
          %s1356 = smul.u32 32, %s29
        $region36: #{tpu_custom_call.1} parent=31 // pred_fallthru
          _
        // Predicated region
        $region37: #{tpu_custom_call.1} parent=31 // pred_check
          %p1357 = pneg %p154
        $region38: #{tpu_custom_call.1} parent=31 // pred_check_branch
          %1359 = sbr.rel (%p1357) target = $region40
        $region39: #{tpu_custom_call.1} parent=31 // pred_region
          %s1360 = smul.u32 32, %s29
        $region40: #{tpu_custom_call.1} parent=31 // pred_fallthru
          _
        // Predicated region
        $region41: #{tpu_custom_call.1} parent=31 // pred_check
          %p1361 = pneg %p182
        $region42: #{tpu_custom_call.1} parent=31 // pred_check_branch
          %1363 = sbr.rel (%p1361) target = $region44
        $region43: #{tpu_custom_call.1} parent=31 // pred_region
          %s1365 = ssub.s32 16, 16
          %1366 = vsyncadd %s1346, %s1365
          %s1367 = sadd.s32 %s29, %s28
          %s1368 = smul.addr %s1367, 16
          %s1369 = scalar_lea.hbm %s5, %s1368
          %s1371 = sshll.u32 %s1348, 4
          %s1372 = int_to_ptr.vmem [resolvable:$true] %s1371
          %1374 = dma.vmem_to_hbm [thread:$0]  %s1372, 16, %s1369, %s1346
        $region44: #{tpu_custom_call.1} parent=31 // pred_fallthru
          _
        // Predicated region
        $region45: #{tpu_custom_call.1} parent=31 // pred_check
          %p1375 = pneg %p210
        $region46: #{tpu_custom_call.1} parent=31 // pred_check_branch
          %1377 = sbr.rel (%p1375) target = $region48
        $region47: #{tpu_custom_call.1} parent=31 // pred_region
          %s1379 = ssub.s32 16, 16
          %1380 = vsyncadd %s1350, %s1379
          %s1381 = sadd.s32 %s29, %s28
          %s1382 = smul.addr %s1381, 16
          %s1383 = scalar_lea.hbm %s6, %s1382
          %s1385 = sshll.u32 %s1352, 4
          %s1386 = int_to_ptr.vmem [resolvable:$true] %s1385
          %1388 = dma.vmem_to_hbm [thread:$0]  %s1386, 16, %s1383, %s1350
        $region48: #{tpu_custom_call.1} parent=31 // pred_fallthru
          _
      $region32: #{tpu_custom_call.1} parent=5 // pred_fallthru
        _
      %p1389 = scmp.le.s32.totalorder 2, %s19
      // Predicated region
      $region49: #{tpu_custom_call.1} parent=5 // pred_check
        %p1390 = pneg %p1389
      $region50: #{tpu_custom_call.1} parent=5 // pred_check_branch
        %1392 = sbr.rel (%p1390) target = $region52
      $region51: #{tpu_custom_call.1} parent=5 // pred_region
        %s1393 = ssub.s32 %s19, 2
        // Predicated region
        $region53: #{tpu_custom_call.1} parent=51 // pred_check
          %p1394 = pneg %p132
        $region54: #{tpu_custom_call.1} parent=51 // pred_check_branch
          %1396 = sbr.rel (%p1394) target = $region56
        $region55: #{tpu_custom_call.1} parent=51 // pred_region
          %s1397 = smul.u32 32, %s31
          %p1398 = scmp.lt.s32.totalorder %s30, 1
          %s1399 = scalar_select %p1398, %s30, 1
          %p1400 = scmp.lt.s32.totalorder %s1397, 31
          %s1401 = scalar_select %p1400, %s1397, 31
          %s1402 = smul.addr %s1399, 32
          %s1403 = sadd.s32 %s1401, %s1402
          %s1404 = smul.addr %s1403, 4
          %s1405 = scalar_lea.vmem %s3, %s1404
        $region56: #{tpu_custom_call.1} parent=51 // pred_fallthru
          _
        // Predicated region
        $region57: #{tpu_custom_call.1} parent=51 // pred_check
          %p1406 = pneg %p160
        $region58: #{tpu_custom_call.1} parent=51 // pred_check_branch
          %1408 = sbr.rel (%p1406) target = $region60
        $region59: #{tpu_custom_call.1} parent=51 // pred_region
          %s1409 = smul.u32 32, %s31
          %p1410 = scmp.lt.s32.totalorder %s30, 1
          %s1411 = scalar_select %p1410, %s30, 1
          %p1412 = scmp.lt.s32.totalorder %s1409, 31
          %s1413 = scalar_select %p1412, %s1409, 31
          %s1414 = smul.addr %s1411, 32
          %s1415 = sadd.s32 %s1413, %s1414
          %s1416 = smul.addr %s1415, 4
          %s1417 = scalar_lea.vmem %s4, %s1416
        $region60: #{tpu_custom_call.1} parent=51 // pred_fallthru
          _
        // Predicated region
        $region61: #{tpu_custom_call.1} parent=51 // pred_check
          %p1418 = pneg %p188
        $region62: #{tpu_custom_call.1} parent=51 // pred_check_branch
          %1420 = sbr.rel (%p1418) target = $region64
        $region63: #{tpu_custom_call.1} parent=51 // pred_region
          %s1421 = sand.u32 %s173, 1
          %s1422 = scalar_lea.sflag [#allocation3], %s1421
          %s1423 = sand.u32 %s173, 1
          %s1424 = scalar_lea.vmem [#allocation2], %s1423
          %1425 = dma.done %s1422, 16
        $region64: #{tpu_custom_call.1} parent=51 // pred_fallthru
          _
        // Predicated region
        $region65: #{tpu_custom_call.1} parent=51 // pred_check
          %p1426 = pneg %p216
        $region66: #{tpu_custom_call.1} parent=51 // pred_check_branch
          %1428 = sbr.rel (%p1426) target = $region68
        $region67: #{tpu_custom_call.1} parent=51 // pred_region
          %s1429 = sand.u32 %s201, 1
          %s1430 = scalar_lea.sflag [#allocation5], %s1429
          %s1431 = sand.u32 %s201, 1
          %s1432 = scalar_lea.vmem [#allocation4], %s1431
          %1433 = dma.done %s1430, 16
        $region68: #{tpu_custom_call.1} parent=51 // pred_fallthru
          _
      $region52: #{tpu_custom_call.1} parent=5 // pred_fallthru
        _
    $region6: #{tpu_custom_call.1} parent=1 // loop_footer
      %s23 = sadd.s32 1, %s19
    $region7: #{tpu_custom_call.1} parent=1 // loop_footer_branch
      %18 = sbr.rel target = $region3
    $region8: #{tpu_custom_call.1} parent=1 // loop_exit
      _
    %1434 = vsyncpa [#allocation3], 1
    %s1435 = scalar_lea.sflag [#allocation3], 1
    %1436 = vsyncpa %s1435, 1
    %1437 = vsyncpa [#allocation5], 1
    %s1438 = scalar_lea.sflag [#allocation5], 1
    %1439 = vsyncpa %s1438, 1

</llo_original>
